<compile_context>
chip_gen: v5e
topology: v5e:2x2
jax: 0.10.0
libtpu: 0.0.40
codegen_flags: <defaults>
</compile_context>

<pallas_src>
import functools

import jax
import jax.numpy as jnp
from jax import lax
from jax.experimental import pallas as pl
from jax.experimental.pallas import tpu as pltpu

# --- model hyper-parameters (small, lane-aligned stand-ins for the 768-d model) ---
PROJ_DIM = 128            # stands in for proj_dim=768 (kept a multiple of 128 lanes)
NUM_EXPERT = 16
NUM_MOD = 2
TOP_K = 4
OUT_DIM = 101
OUT_PAD = 128             # lane-dense padded output width; sliced back to 101 in wrapper
EXPERT_HIDDEN = PROJ_DIM // 4
TOK_VOCAB = 64
TOK_EMB = 32
ROW_PAD = 8               # per-modality row bucket (sublane multiple); 2*ROW_PAD = bf16 tile


# ============================ fused Pallas kernel ============================

def _food_fused_kernel(vfeat_ref, tfeat_ref,
                       wv_ref, bv_ref, wt_ref, bt_ref,
                       wg_ref, expand_ref, w1_ref, b1_ref, w2_ref, b2_ref,
                       wo_ref, bo_ref,
                       out_ref, pool_ref, aux_ref,
                       *, bsz, bp, num_expert, k):
    f32 = jnp.float32
    bf16 = jnp.bfloat16
    n_rows = 2 * bp

    # ---- encoder pooler stubs: linear + tanh (bf16 in, f32 accumulate) ----
    v_pool = jnp.tanh(
        jnp.dot(vfeat_ref[...], wv_ref[...], preferred_element_type=f32) + bv_ref[...])
    t_pool = jnp.tanh(
        jnp.dot(tfeat_ref[...], wt_ref[...], preferred_element_type=f32) + bt_ref[...])
    # write straight into the pooled-output ref (no sublane concat/relayout)
    pool_ref[0:bp, :] = v_pool.astype(pool_ref.dtype)
    pool_ref[bp:n_rows, :] = t_pool.astype(pool_ref.dtype)
    x = pool_ref[...]                                                   # [2BP, D] f32

    # ---- gate logits: both modality gate matrices in one [D, 2E] matmul (f32 path) ----
    logits_all = jnp.dot(x, wg_ref[...], preferred_element_type=f32)    # [2BP, 2E]
    row = lax.broadcasted_iota(jnp.int32, (n_rows, num_expert), 0)
    is_mod0 = row < bp
    logits = jnp.where(is_mod0,
                       logits_all[:, :num_expert],
                       logits_all[:, num_expert:])                      # [2BP, E]

    # eval-mode (noise-free) top-k gating: iterative argmax + mask (k is static)
    col = lax.broadcasted_iota(jnp.int32, (n_rows, num_expert), 1)
    neg = f32(-1e30)
    masked = logits
    selected = jnp.zeros((n_rows, num_expert), dtype=jnp.bool_)
    for _ in range(k):
        m = jnp.max(masked, axis=1, keepdims=True)
        is_max = masked == m
        first = jnp.min(jnp.where(is_max, col, num_expert), axis=1, keepdims=True)
        onehot = col == first
        selected = jnp.logical_or(selected, onehot)
        masked = jnp.where(onehot, neg, masked)

    # softmax over the selected logits only (f32; EUP reciprocal for the normalization)
    mx = jnp.max(jnp.where(selected, logits, neg), axis=1, keepdims=True)
    ex = jnp.where(selected, jnp.exp(logits - mx), 0.0)
    inv_sum = pl.reciprocal(jnp.sum(ex, axis=1, keepdims=True), approx=True)
    gates = ex * inv_sum                                                # [2BP, E]

    # per-modality expert load from the selection mask; padded rows masked out
    valid = jnp.logical_or(row < bsz,
                           jnp.logical_and(row >= bp, row < bp + bsz))
    sel_f = jnp.where(valid, selected.astype(f32), 0.0)
    load0 = jnp.sum(jnp.where(is_mod0, sel_f, 0.0), axis=0, keepdims=True)    # [1, E]
    load1 = jnp.sum(jnp.where(is_mod0, 0.0, sel_f), axis=0, keepdims=True)    # [1, E]

    # ---- MoE: experts stacked into two lane-dense bf16 MXU matmuls ----
    x_bf = x.astype(bf16)
    # h = relu(x @ W1_stacked + b1_stacked)            -> [2BP, E*H] (E*H = 512 lanes)
    h = jnp.maximum(
        jnp.dot(x_bf, w1_ref[...], preferred_element_type=f32) + b1_ref[...], 0.0)
    # gates [2BP, E] -> [2BP, E*H] via the precomputed 0/1 expansion matrix input
    gate_expand = jnp.dot(gates, expand_ref[...], preferred_element_type=f32)
    # sum_e g_e * (h_e @ W2_e + b2_e)
    hg = (h * gate_expand).astype(bf16)
    moe_out = jnp.dot(hg, w2_ref[...], preferred_element_type=f32)            # [2BP, D]
    moe_out = moe_out + jnp.dot(gates, b2_ref[...], preferred_element_type=f32)
    hres = jnp.maximum(moe_out, 0.0) + x                  # relu(moe(x, gates)) + residual

    # ---- output layer (padded to 128 lanes) and modality sum: out = out_t + out_v ----
    y = jnp.dot(hres.astype(bf16), wo_ref[...], preferred_element_type=f32) + bo_ref[...]
    out_ref[...] = (y[0:bp, :] + y[bp:n_rows, :]).astype(out_ref.dtype)

    # ---- lane-dense aux slab: rows 0..2BP-1 = gates (padded), rows 2BP..2BP+7 = load ----
    lane_pad = jnp.zeros((n_rows, 128 - num_expert), f32)
    aux_ref[0:n_rows, :] = jnp.concatenate([gates, lane_pad], axis=1)
    load_rows = jnp.concatenate(
        [load0, load1, jnp.zeros((6, num_expert), f32)], axis=0)              # [8, E]
    aux_ref[n_rows:n_rows + 8, :] = jnp.concatenate(
        [load_rows, jnp.zeros((8, 128 - num_expert), f32)], axis=1)


def food_fused(v_feat, t_feat, params, bsz):
    """One pallas_call for poolers + gate + MoE + output layer, both modalities."""
    bp = ROW_PAD
    d = PROJ_DIM
    e = NUM_EXPERT
    hdim = EXPERT_HIDDEN
    eh = e * hdim
    bf16 = jnp.bfloat16

    # row padding to the sublane bucket + bf16 activation inputs
    v_in = jnp.pad(v_feat, ((0, bp - bsz), (0, 0))).astype(bf16)              # [BP, 768]
    t_in = jnp.pad(t_feat, ((0, bp - bsz), (0, 0))).astype(bf16)              # [BP, 32]

    # stacked / padded / bf16 weight views (pure layout plumbing; cheap XLA ops)
    wv = params["enc_v_w"].astype(bf16)                                       # [768, D]
    wt = params["enc_t_w"].astype(bf16)                                       # [32, D]
    gate_w_cat = jnp.concatenate(
        [params["gate_w"][m] for m in range(NUM_MOD)], axis=1)                # [D, 2E] f32
    # 0/1 expansion matrix (constant under jit): expand[e, e*H:(e+1)*H] = 1
    expand = (jnp.arange(e)[:, None] == (jnp.arange(eh)[None, :] // hdim)
              ).astype(jnp.float32)                                           # [E, E*H]
    w1s = jnp.transpose(params["moe_w1"], (1, 0, 2)).reshape(d, eh).astype(bf16)  # [D, E*H]
    b1s = params["moe_b1"].reshape(1, eh)                                     # [1, E*H] f32
    w2s = params["moe_w2"].reshape(eh, d).astype(bf16)                        # [E*H, D]
    b2e = params["moe_b2"].reshape(e, d)                                      # [E, D] f32
    wo = jnp.pad(params["out_w"], ((0, 0), (0, OUT_PAD - OUT_DIM))).astype(bf16)  # [D, 128]
    bo = jnp.pad(params["out_b"], ((0, 0), (0, OUT_PAD - OUT_DIM)))           # [1, 128] f32

    inputs = (v_in, t_in,
              wv, params["enc_v_b"], wt, params["enc_t_b"],
              gate_w_cat, expand, w1s, b1s, w2s, b2e, wo, bo)

    def full2d(a):
        return pl.BlockSpec(a.shape, lambda i: (0, 0))

    out_pad, pooled, aux = pl.pallas_call(
        functools.partial(_food_fused_kernel, bsz=bsz, bp=bp,
                          num_expert=e, k=TOP_K),
        grid=(1,),
        in_specs=[full2d(a) for a in inputs],
        out_specs=[
            pl.BlockSpec((bp, OUT_PAD), lambda i: (0, 0)),
            pl.BlockSpec((2 * bp, d), lambda i: (0, 0)),
            pl.BlockSpec((2 * bp + 8, OUT_PAD), lambda i: (0, 0)),
        ],
        out_shape=(
            jax.ShapeDtypeStruct((bp, OUT_PAD), jnp.float32),
            jax.ShapeDtypeStruct((2 * bp, d), jnp.float32),
            jax.ShapeDtypeStruct((2 * bp + 8, OUT_PAD), jnp.float32),
        ),
        compiler_params=pltpu.CompilerParams(
            dimension_semantics=("arbitrary",),
            vmem_limit_bytes=32 * 1024 * 1024),
    )(*inputs)
    return out_pad, pooled, aux


# ============================ model glue ============================

def init_params(key):
    def nrm(k, shape, scale=0.02):
        return (scale * jax.random.normal(k, shape)).astype(jnp.float32)

    ks = jax.random.split(key, 8)
    v_in = 3 * 16 * 16
    return {
        # encoder pooler stubs
        "enc_v_w": nrm(ks[0], (v_in, PROJ_DIM)),
        "enc_v_b": jnp.zeros((1, PROJ_DIM), jnp.float32),
        "tok_emb": nrm(ks[1], (TOK_VOCAB, TOK_EMB)),
        "enc_t_w": nrm(ks[2], (TOK_EMB, PROJ_DIM)),
        "enc_t_b": jnp.zeros((1, PROJ_DIM), jnp.float32),
        # Classifier.gatting_network: one gate weight per modality
        "gate_w": nrm(ks[3], (NUM_MOD, PROJ_DIM, NUM_EXPERT)),
        # Classifier.moe: 16 experts, 2-layer MLP (D -> D/4 -> D)
        "moe_w1": nrm(ks[4], (NUM_EXPERT, PROJ_DIM, EXPERT_HIDDEN)),
        "moe_b1": jnp.zeros((NUM_EXPERT, 1, EXPERT_HIDDEN), jnp.float32),
        "moe_w2": nrm(ks[5], (NUM_EXPERT, EXPERT_HIDDEN, PROJ_DIM)),
        "moe_b2": jnp.zeros((NUM_EXPERT, 1, PROJ_DIM), jnp.float32),
        # Classifier.out_layer
        "out_w": nrm(ks[6], (PROJ_DIM, OUT_DIM)),
        "out_b": jnp.zeros((1, OUT_DIM), jnp.float32),
    }


def food_model_forward(params, v, t):
    bsz = v.shape[0]
    bp = ROW_PAD
    # TODO(synk): pretrained ViT encoder not reproduced; stub = flatten -> linear+tanh pooler (in the fused kernel).
    v_feat = jnp.reshape(v, (bsz, -1))
    # TODO(synk): pretrained BERT encoder not reproduced; stub = embed + mean-pool (plain JAX gather) -> linear+tanh pooler.
    t_emb = jnp.take(params["tok_emb"], t, axis=0)          # [B, S, TOK_EMB]
    t_feat = jnp.mean(t_emb, axis=1)

    out_pad, pooled, aux = food_fused(v_feat, t_feat, params, bsz)

    out = out_pad[:bsz, :OUT_DIM]                            # out_t + out_v (pad cols/rows dropped)
    v_pool, t_pool = pooled[:bsz], pooled[bp:bp + bsz]
    gates_v = aux[:bsz, :NUM_EXPERT]
    gates_t = aux[bp:bp + bsz, :NUM_EXPERT]
    load_v = aux[2 * bp, :NUM_EXPERT]
    load_t = aux[2 * bp + 1, :NUM_EXPERT]
    hs = [lax.stop_gradient(v_pool), lax.stop_gradient(t_pool)]
    return out, hs, [[gates_v, gates_t], [load_v, load_t]]


if __name__ == "__main__":
    key = jax.random.PRNGKey(0)
    kv, kt = jax.random.split(key)
    B = 2
    v = jax.random.normal(kv, (B, 3, 16, 16), dtype=jnp.float32)          # NCHW image
    t = jax.random.randint(kt, (B, 8), 0, TOK_VOCAB, dtype=jnp.int32)     # token ids

    params = init_params(jax.random.PRNGKey(42))

    out, hs, (gates_list, load_list) = jax.jit(food_model_forward)(params, v, t)
    jax.block_until_ready(out)

    # light sanity checks on the MoE gate semantics
    assert out.shape == (B, OUT_DIM)
    assert bool(jnp.all(jnp.isfinite(out)))
    for g in gates_list:
        assert g.shape == (B, NUM_EXPERT)
        assert bool(jnp.all(jnp.abs(jnp.sum(g, axis=1) - 1.0) < 2e-3))    # approx-recip tolerance
        nz = jnp.sum((g > 0).astype(jnp.int32), axis=1)
        assert bool(jnp.all((nz >= 1) & (nz <= TOP_K)))
    for l in load_list:
        assert l.shape == (NUM_EXPERT,)
        assert bool(jnp.sum(l) == B * TOP_K)                # exactly k experts selected per row
    for h in hs:
        assert h.shape == (B, PROJ_DIM)

    print("KERNEL_OK")
</pallas_src>

<mosaic_0001>
module attributes {stable_mosaic.version = 11 : i64} {
  func.func @_food_fused_kernel(%arg0: i32, %arg1: memref<8x768xbf16, #tpu.memory_space<vmem>>, %arg2: memref<8x32xbf16, #tpu.memory_space<vmem>>, %arg3: memref<768x128xbf16, #tpu.memory_space<vmem>>, %arg4: memref<1x128xf32, #tpu.memory_space<vmem>>, %arg5: memref<32x128xbf16, #tpu.memory_space<vmem>>, %arg6: memref<1x128xf32, #tpu.memory_space<vmem>>, %arg7: memref<128x32xf32, #tpu.memory_space<vmem>>, %arg8: memref<16x512xf32, #tpu.memory_space<vmem>>, %arg9: memref<128x512xbf16, #tpu.memory_space<vmem>>, %arg10: memref<1x512xf32, #tpu.memory_space<vmem>>, %arg11: memref<512x128xbf16, #tpu.memory_space<vmem>>, %arg12: memref<16x128xf32, #tpu.memory_space<vmem>>, %arg13: memref<128x128xbf16, #tpu.memory_space<vmem>>, %arg14: memref<1x128xf32, #tpu.memory_space<vmem>>, %arg15: memref<8x128xf32, #tpu.memory_space<vmem>>, %arg16: memref<16x128xf32, #tpu.memory_space<vmem>>, %arg17: memref<24x128xf32, #tpu.memory_space<vmem>>) attributes {dimension_semantics = [#tpu.dimension_semantics<arbitrary>], iteration_bounds = array<i64: 1>, scalar_prefetch = 0 : i64, scratch_operands = 0 : i64, tpu.core_type = #tpu.core_type<tc>, window_params = [{pipeline_mode = #tpu.pipeline_mode<synchronous>, transform_indices = @transform_0, window_bounds = array<i64: 8, 768>}, {pipeline_mode = #tpu.pipeline_mode<synchronous>, transform_indices = @transform_1, window_bounds = array<i64: 8, 32>}, {pipeline_mode = #tpu.pipeline_mode<synchronous>, transform_indices = @transform_2, window_bounds = array<i64: 768, 128>}, {pipeline_mode = #tpu.pipeline_mode<synchronous>, transform_indices = @transform_3, window_bounds = array<i64: 1, 128>}, {pipeline_mode = #tpu.pipeline_mode<synchronous>, transform_indices = @transform_4, window_bounds = array<i64: 32, 128>}, {pipeline_mode = #tpu.pipeline_mode<synchronous>, transform_indices = @transform_5, window_bounds = array<i64: 1, 128>}, {pipeline_mode = #tpu.pipeline_mode<synchronous>, transform_indices = @transform_6, window_bounds = array<i64: 128, 32>}, {pipeline_mode = #tpu.pipeline_mode<synchronous>, transform_indices = @transform_7, window_bounds = array<i64: 16, 512>}, {pipeline_mode = #tpu.pipeline_mode<synchronous>, transform_indices = @transform_8, window_bounds = array<i64: 128, 512>}, {pipeline_mode = #tpu.pipeline_mode<synchronous>, transform_indices = @transform_9, window_bounds = array<i64: 1, 512>}, {pipeline_mode = #tpu.pipeline_mode<synchronous>, transform_indices = @transform_10, window_bounds = array<i64: 512, 128>}, {pipeline_mode = #tpu.pipeline_mode<synchronous>, transform_indices = @transform_11, window_bounds = array<i64: 16, 128>}, {pipeline_mode = #tpu.pipeline_mode<synchronous>, transform_indices = @transform_12, window_bounds = array<i64: 128, 128>}, {pipeline_mode = #tpu.pipeline_mode<synchronous>, transform_indices = @transform_13, window_bounds = array<i64: 1, 128>}, {pipeline_mode = #tpu.pipeline_mode<synchronous>, transform_indices = @transform_14, window_bounds = array<i64: 8, 128>}, {pipeline_mode = #tpu.pipeline_mode<synchronous>, transform_indices = @transform_15, window_bounds = array<i64: 16, 128>}, {pipeline_mode = #tpu.pipeline_mode<synchronous>, transform_indices = @transform_16, window_bounds = array<i64: 24, 128>}]} {
    %c0 = arith.constant 0 : index
    %c0_0 = arith.constant 0 : index
    %0 = vector.load %arg1[%c0, %c0_0] : memref<8x768xbf16, #tpu.memory_space<vmem>>, vector<8x768xbf16>
    %c0_1 = arith.constant 0 : index
    %c0_2 = arith.constant 0 : index
    %1 = vector.load %arg3[%c0_1, %c0_2] : memref<768x128xbf16, #tpu.memory_space<vmem>>, vector<768x128xbf16>
    %cst = arith.constant dense<0.000000e+00> : vector<8x128xf32>
    %2 = tpu.matmul %0, %1, %cst {dimension_numbers = #tpu.dot_dimension_numbers<[1], [0], [0], [1], [0, 0, 1, 1], [], []>} : vector<8x768xbf16>, vector<768x128xbf16>, vector<8x128xf32> -> vector<8x128xf32>
    %c0_3 = arith.constant 0 : index
    %c0_4 = arith.constant 0 : index
    %3 = vector.load %arg4[%c0_3, %c0_4] : memref<1x128xf32, #tpu.memory_space<vmem>>, vector<1x128xf32>
    %4 = vector.broadcast %3 : vector<1x128xf32> to vector<8x128xf32>
    %5 = arith.addf %2, %4 : vector<8x128xf32>
    %6 = math.tanh %5 : vector<8x128xf32>
    %c0_5 = arith.constant 0 : index
    %c0_6 = arith.constant 0 : index
    %7 = vector.load %arg2[%c0_5, %c0_6] : memref<8x32xbf16, #tpu.memory_space<vmem>>, vector<8x32xbf16>
    %c0_7 = arith.constant 0 : index
    %c0_8 = arith.constant 0 : index
    %8 = vector.load %arg5[%c0_7, %c0_8] : memref<32x128xbf16, #tpu.memory_space<vmem>>, vector<32x128xbf16>
    %cst_9 = arith.constant dense<0.000000e+00> : vector<8x128xf32>
    %9 = tpu.matmul %7, %8, %cst_9 {dimension_numbers = #tpu.dot_dimension_numbers<[1], [0], [0], [1], [0, 0, 1, 1], [], []>} : vector<8x32xbf16>, vector<32x128xbf16>, vector<8x128xf32> -> vector<8x128xf32>
    %c0_10 = arith.constant 0 : index
    %c0_11 = arith.constant 0 : index
    %10 = vector.load %arg6[%c0_10, %c0_11] : memref<1x128xf32, #tpu.memory_space<vmem>>, vector<1x128xf32>
    %11 = vector.broadcast %10 : vector<1x128xf32> to vector<8x128xf32>
    %12 = arith.addf %9, %11 : vector<8x128xf32>
    %13 = math.tanh %12 : vector<8x128xf32>
    %c0_12 = arith.constant 0 : index
    %c0_13 = arith.constant 0 : index
    %14 = vector.load %arg16[%c0_12, %c0_13] : memref<16x128xf32, #tpu.memory_space<vmem>>, vector<8x128xf32>
    tpu.vector_store %arg16[%c0_12, %c0_13], %6 {strides = array<i32>} : memref<16x128xf32, #tpu.memory_space<vmem>>, vector<8x128xf32>,
    %c8 = arith.constant 8 : index
    %c0_14 = arith.constant 0 : index
    %15 = vector.load %arg16[%c8, %c0_14] : memref<16x128xf32, #tpu.memory_space<vmem>>, vector<8x128xf32>
    tpu.vector_store %arg16[%c8, %c0_14], %13 {strides = array<i32>} : memref<16x128xf32, #tpu.memory_space<vmem>>, vector<8x128xf32>,
    %c0_15 = arith.constant 0 : index
    %c0_16 = arith.constant 0 : index
    %16 = vector.load %arg16[%c0_15, %c0_16] : memref<16x128xf32, #tpu.memory_space<vmem>>, vector<16x128xf32>
    %c0_17 = arith.constant 0 : index
    %c0_18 = arith.constant 0 : index
    %17 = vector.load %arg7[%c0_17, %c0_18] : memref<128x32xf32, #tpu.memory_space<vmem>>, vector<128x32xf32>
    %cst_19 = arith.constant dense<0.000000e+00> : vector<16x32xf32>
    %18 = tpu.matmul %16, %17, %cst_19 {dimension_numbers = #tpu.dot_dimension_numbers<[1], [0], [0], [1], [0, 0, 1, 1], [], []>} : vector<16x128xf32>, vector<128x32xf32>, vector<16x32xf32> -> vector<16x32xf32>
    %19 = tpu.iota {dimensions = array<i32: 0>} : vector<16x16xi32>
    %c8_i32 = arith.constant 8 : i32
    %20 = vector.broadcast %c8_i32 : i32 to vector<16x16xi32>
    %21 = arith.cmpi slt, %19, %20 : vector<16x16xi32>
    %22 = vector.extract_strided_slice %18 {offsets = [0, 0], sizes = [16, 16], strides = [1, 1]} : vector<16x32xf32> to vector<16x16xf32>
    %23 = vector.extract_strided_slice %18 {offsets = [0, 16], sizes = [16, 16], strides = [1, 1]} : vector<16x32xf32> to vector<16x16xf32>
    %24 = arith.select %21, %22, %23 : vector<16x16xi1>, vector<16x16xf32>
    %25 = tpu.iota {dimensions = array<i32: 1>} : vector<16x16xi32>
    %false = arith.constant false
    %26 = vector.broadcast %false : i1 to vector<16x16xi1>
    %cst_20 = arith.constant dense<0xFF800000> : vector<16xf32>
    %27 = vector.multi_reduction <maximumf>, %24, %cst_20 [1] : vector<16x16xf32> to vector<16xf32>
    %28 = vector.shape_cast %27 : vector<16xf32> to vector<16x1xf32>
    %29 = vector.broadcast %28 : vector<16x1xf32> to vector<16x16xf32>
    %30 = arith.cmpf oeq, %24, %29 : vector<16x16xf32>
    %c16_i32 = arith.constant 16 : i32
    %31 = vector.broadcast %c16_i32 : i32 to vector<16x16xi32>
    %32 = arith.select %30, %25, %31 : vector<16x16xi1>, vector<16x16xi32>
    %cst_21 = arith.constant dense<2147483647> : vector<16xi32>
    %33 = vector.multi_reduction <minsi>, %32, %cst_21 [1] : vector<16x16xi32> to vector<16xi32>
    %34 = vector.shape_cast %33 : vector<16xi32> to vector<16x1xi32>
    %35 = vector.broadcast %34 : vector<16x1xi32> to vector<16x16xi32>
    %36 = arith.cmpi eq, %25, %35 : vector<16x16xi32>
    %37 = arith.ori %26, %36 : vector<16x16xi1>
    %cst_22 = arith.constant -1.000000e+30 : f32
    %38 = vector.broadcast %cst_22 : f32 to vector<16x16xf32>
    %39 = arith.select %36, %38, %24 : vector<16x16xi1>, vector<16x16xf32>
    %cst_23 = arith.constant dense<0xFF800000> : vector<16xf32>
    %40 = vector.multi_reduction <maximumf>, %39, %cst_23 [1] : vector<16x16xf32> to vector<16xf32>
    %41 = vector.shape_cast %40 : vector<16xf32> to vector<16x1xf32>
    %42 = vector.broadcast %41 : vector<16x1xf32> to vector<16x16xf32>
    %43 = arith.cmpf oeq, %39, %42 : vector<16x16xf32>
    %c16_i32_24 = arith.constant 16 : i32
    %44 = vector.broadcast %c16_i32_24 : i32 to vector<16x16xi32>
    %45 = arith.select %43, %25, %44 : vector<16x16xi1>, vector<16x16xi32>
    %cst_25 = arith.constant dense<2147483647> : vector<16xi32>
    %46 = vector.multi_reduction <minsi>, %45, %cst_25 [1] : vector<16x16xi32> to vector<16xi32>
    %47 = vector.shape_cast %46 : vector<16xi32> to vector<16x1xi32>
    %48 = vector.broadcast %47 : vector<16x1xi32> to vector<16x16xi32>
    %49 = arith.cmpi eq, %25, %48 : vector<16x16xi32>
    %50 = arith.ori %37, %49 : vector<16x16xi1>
    %cst_26 = arith.constant -1.000000e+30 : f32
    %51 = vector.broadcast %cst_26 : f32 to vector<16x16xf32>
    %52 = arith.select %49, %51, %39 : vector<16x16xi1>, vector<16x16xf32>
    %cst_27 = arith.constant dense<0xFF800000> : vector<16xf32>
    %53 = vector.multi_reduction <maximumf>, %52, %cst_27 [1] : vector<16x16xf32> to vector<16xf32>
    %54 = vector.shape_cast %53 : vector<16xf32> to vector<16x1xf32>
    %55 = vector.broadcast %54 : vector<16x1xf32> to vector<16x16xf32>
    %56 = arith.cmpf oeq, %52, %55 : vector<16x16xf32>
    %c16_i32_28 = arith.constant 16 : i32
    %57 = vector.broadcast %c16_i32_28 : i32 to vector<16x16xi32>
    %58 = arith.select %56, %25, %57 : vector<16x16xi1>, vector<16x16xi32>
    %cst_29 = arith.constant dense<2147483647> : vector<16xi32>
    %59 = vector.multi_reduction <minsi>, %58, %cst_29 [1] : vector<16x16xi32> to vector<16xi32>
    %60 = vector.shape_cast %59 : vector<16xi32> to vector<16x1xi32>
    %61 = vector.broadcast %60 : vector<16x1xi32> to vector<16x16xi32>
    %62 = arith.cmpi eq, %25, %61 : vector<16x16xi32>
    %63 = arith.ori %50, %62 : vector<16x16xi1>
    %cst_30 = arith.constant -1.000000e+30 : f32
    %64 = vector.broadcast %cst_30 : f32 to vector<16x16xf32>
    %65 = arith.select %62, %64, %52 : vector<16x16xi1>, vector<16x16xf32>
    %cst_31 = arith.constant dense<0xFF800000> : vector<16xf32>
    %66 = vector.multi_reduction <maximumf>, %65, %cst_31 [1] : vector<16x16xf32> to vector<16xf32>
    %67 = vector.shape_cast %66 : vector<16xf32> to vector<16x1xf32>
    %68 = vector.broadcast %67 : vector<16x1xf32> to vector<16x16xf32>
    %69 = arith.cmpf oeq, %65, %68 : vector<16x16xf32>
    %c16_i32_32 = arith.constant 16 : i32
    %70 = vector.broadcast %c16_i32_32 : i32 to vector<16x16xi32>
    %71 = arith.select %69, %25, %70 : vector<16x16xi1>, vector<16x16xi32>
    %cst_33 = arith.constant dense<2147483647> : vector<16xi32>
    %72 = vector.multi_reduction <minsi>, %71, %cst_33 [1] : vector<16x16xi32> to vector<16xi32>
    %73 = vector.shape_cast %72 : vector<16xi32> to vector<16x1xi32>
    %74 = vector.broadcast %73 : vector<16x1xi32> to vector<16x16xi32>
    %75 = arith.cmpi eq, %25, %74 : vector<16x16xi32>
    %76 = arith.ori %63, %75 : vector<16x16xi1>
    %cst_34 = arith.constant -1.000000e+30 : f32
    %77 = vector.broadcast %cst_34 : f32 to vector<16x16xf32>
    %78 = arith.select %76, %24, %77 : vector<16x16xi1>, vector<16x16xf32>
    %cst_35 = arith.constant dense<0xFF800000> : vector<16xf32>
    %79 = vector.multi_reduction <maximumf>, %78, %cst_35 [1] : vector<16x16xf32> to vector<16xf32>
    %80 = vector.shape_cast %79 : vector<16xf32> to vector<16x1xf32>
    %81 = vector.broadcast %80 : vector<16x1xf32> to vector<16x16xf32>
    %82 = arith.subf %24, %81 : vector<16x16xf32>
    %83 = math.exp %82 : vector<16x16xf32>
    %cst_36 = arith.constant 0.000000e+00 : f32
    %84 = vector.broadcast %cst_36 : f32 to vector<16x16xf32>
    %85 = arith.select %76, %83, %84 : vector<16x16xi1>, vector<16x16xf32>
    %cst_37 = arith.constant dense<0.000000e+00> : vector<16xf32>
    %86 = vector.multi_reduction <add>, %85, %cst_37 [1] : vector<16x16xf32> to vector<16xf32>
    %87 = vector.shape_cast %86 : vector<16xf32> to vector<16x1xf32>
    %88 = tpu.reciprocal %87 {approx = true} : vector<16x1xf32> -> vector<16x1xf32>
    %89 = vector.broadcast %88 : vector<16x1xf32> to vector<16x16xf32>
    %90 = arith.mulf %85, %89 : vector<16x16xf32>
    %c2_i32 = arith.constant 2 : i32
    %91 = vector.broadcast %c2_i32 : i32 to vector<16x16xi32>
    %92 = arith.cmpi slt, %19, %91 : vector<16x16xi32>
    %c8_i32_38 = arith.constant 8 : i32
    %93 = vector.broadcast %c8_i32_38 : i32 to vector<16x16xi32>
    %94 = arith.cmpi sge, %19, %93 : vector<16x16xi32>
    %c10_i32 = arith.constant 10 : i32
    %95 = vector.broadcast %c10_i32 : i32 to vector<16x16xi32>
    %96 = arith.cmpi slt, %19, %95 : vector<16x16xi32>
    %97 = arith.andi %94, %96 : vector<16x16xi1>
    %98 = arith.ori %92, %97 : vector<16x16xi1>
    %99 = arith.extui %76 : vector<16x16xi1> to vector<16x16xi32>
    %100 = arith.sitofp %99 : vector<16x16xi32> to vector<16x16xf32>
    %cst_39 = arith.constant 0.000000e+00 : f32
    %101 = vector.broadcast %cst_39 : f32 to vector<16x16xf32>
    %102 = arith.select %98, %100, %101 : vector<16x16xi1>, vector<16x16xf32>
    %cst_40 = arith.constant 0.000000e+00 : f32
    %103 = vector.broadcast %cst_40 : f32 to vector<16x16xf32>
    %104 = arith.select %21, %102, %103 : vector<16x16xi1>, vector<16x16xf32>
    %cst_41 = arith.constant dense<0.000000e+00> : vector<16xf32>
    %105 = vector.multi_reduction <add>, %104, %cst_41 [0] : vector<16x16xf32> to vector<16xf32>
    %106 = vector.shape_cast %105 : vector<16xf32> to vector<1x16xf32>
    %cst_42 = arith.constant 0.000000e+00 : f32
    %107 = vector.broadcast %cst_42 : f32 to vector<16x16xf32>
    %108 = arith.select %21, %107, %102 : vector<16x16xi1>, vector<16x16xf32>
    %cst_43 = arith.constant dense<0.000000e+00> : vector<16xf32>
    %109 = vector.multi_reduction <add>, %108, %cst_43 [0] : vector<16x16xf32> to vector<16xf32>
    %110 = vector.shape_cast %109 : vector<16xf32> to vector<1x16xf32>
    %111 = arith.truncf %16 : vector<16x128xf32> to vector<16x128xbf16>
    %c0_44 = arith.constant 0 : index
    %c0_45 = arith.constant 0 : index
    %112 = vector.load %arg9[%c0_44, %c0_45] : memref<128x512xbf16, #tpu.memory_space<vmem>>, vector<128x512xbf16>
    %cst_46 = arith.constant dense<0.000000e+00> : vector<16x512xf32>
    %113 = tpu.matmul %111, %112, %cst_46 {dimension_numbers = #tpu.dot_dimension_numbers<[1], [0], [0], [1], [0, 0, 1, 1], [], []>} : vector<16x128xbf16>, vector<128x512xbf16>, vector<16x512xf32> -> vector<16x512xf32>
    %c0_47 = arith.constant 0 : index
    %c0_48 = arith.constant 0 : index
    %114 = vector.load %arg10[%c0_47, %c0_48] : memref<1x512xf32, #tpu.memory_space<vmem>>, vector<1x512xf32>
    %115 = vector.broadcast %114 : vector<1x512xf32> to vector<16x512xf32>
    %116 = arith.addf %113, %115 : vector<16x512xf32>
    %cst_49 = arith.constant 0.000000e+00 : f32
    %117 = vector.broadcast %cst_49 : f32 to vector<16x512xf32>
    %118 = arith.maximumf %116, %117 : vector<16x512xf32>
    %c0_50 = arith.constant 0 : index
    %c0_51 = arith.constant 0 : index
    %119 = vector.load %arg8[%c0_50, %c0_51] : memref<16x512xf32, #tpu.memory_space<vmem>>, vector<16x512xf32>
    %cst_52 = arith.constant dense<0.000000e+00> : vector<16x512xf32>
    %120 = tpu.matmul %90, %119, %cst_52 {dimension_numbers = #tpu.dot_dimension_numbers<[1], [0], [0], [1], [0, 0, 1, 1], [], []>} : vector<16x16xf32>, vector<16x512xf32>, vector<16x512xf32> -> vector<16x512xf32>
    %121 = arith.mulf %118, %120 : vector<16x512xf32>
    %122 = arith.truncf %121 : vector<16x512xf32> to vector<16x512xbf16>
    %c0_53 = arith.constant 0 : index
    %c0_54 = arith.constant 0 : index
    %123 = vector.load %arg11[%c0_53, %c0_54] : memref<512x128xbf16, #tpu.memory_space<vmem>>, vector<512x128xbf16>
    %cst_55 = arith.constant dense<0.000000e+00> : vector<16x128xf32>
    %124 = tpu.matmul %122, %123, %cst_55 {dimension_numbers = #tpu.dot_dimension_numbers<[1], [0], [0], [1], [0, 0, 1, 1], [], []>} : vector<16x512xbf16>, vector<512x128xbf16>, vector<16x128xf32> -> vector<16x128xf32>
    %c0_56 = arith.constant 0 : index
    %c0_57 = arith.constant 0 : index
    %125 = vector.load %arg12[%c0_56, %c0_57] : memref<16x128xf32, #tpu.memory_space<vmem>>, vector<16x128xf32>
    %cst_58 = arith.constant dense<0.000000e+00> : vector<16x128xf32>
    %126 = tpu.matmul %90, %125, %cst_58 {dimension_numbers = #tpu.dot_dimension_numbers<[1], [0], [0], [1], [0, 0, 1, 1], [], []>} : vector<16x16xf32>, vector<16x128xf32>, vector<16x128xf32> -> vector<16x128xf32>
    %127 = arith.addf %124, %126 : vector<16x128xf32>
    %cst_59 = arith.constant 0.000000e+00 : f32
    %128 = vector.broadcast %cst_59 : f32 to vector<16x128xf32>
    %129 = arith.maximumf %127, %128 : vector<16x128xf32>
    %130 = arith.addf %129, %16 : vector<16x128xf32>
    %131 = arith.truncf %130 : vector<16x128xf32> to vector<16x128xbf16>
    %c0_60 = arith.constant 0 : index
    %c0_61 = arith.constant 0 : index
    %132 = vector.load %arg13[%c0_60, %c0_61] : memref<128x128xbf16, #tpu.memory_space<vmem>>, vector<128x128xbf16>
    %cst_62 = arith.constant dense<0.000000e+00> : vector<16x128xf32>
    %133 = tpu.matmul %131, %132, %cst_62 {dimension_numbers = #tpu.dot_dimension_numbers<[1], [0], [0], [1], [0, 0, 1, 1], [], []>} : vector<16x128xbf16>, vector<128x128xbf16>, vector<16x128xf32> -> vector<16x128xf32>
    %c0_63 = arith.constant 0 : index
    %c0_64 = arith.constant 0 : index
    %134 = vector.load %arg14[%c0_63, %c0_64] : memref<1x128xf32, #tpu.memory_space<vmem>>, vector<1x128xf32>
    %135 = vector.broadcast %134 : vector<1x128xf32> to vector<16x128xf32>
    %136 = arith.addf %133, %135 : vector<16x128xf32>
    %137 = vector.extract_strided_slice %136 {offsets = [0, 0], sizes = [8, 128], strides = [1, 1]} : vector<16x128xf32> to vector<8x128xf32>
    %138 = vector.extract_strided_slice %136 {offsets = [8, 0], sizes = [8, 128], strides = [1, 1]} : vector<16x128xf32> to vector<8x128xf32>
    %139 = arith.addf %137, %138 : vector<8x128xf32>
    %c0_65 = arith.constant 0 : index
    %c0_66 = arith.constant 0 : index
    %140 = vector.load %arg15[%c0_65, %c0_66] : memref<8x128xf32, #tpu.memory_space<vmem>>, vector<8x128xf32>
    tpu.vector_store %arg15[%c0_65, %c0_66], %139 {strides = array<i32>} : memref<8x128xf32, #tpu.memory_space<vmem>>, vector<8x128xf32>,
    %cst_67 = arith.constant 0.000000e+00 : f32
    %141 = vector.broadcast %cst_67 : f32 to vector<16x112xf32>
    %142 = tpu.concatenate %90, %141 in 1 : vector<16x16xf32>, vector<16x112xf32> -> vector<16x128xf32>
    %c0_68 = arith.constant 0 : index
    %c0_69 = arith.constant 0 : index
    %143 = vector.load %arg17[%c0_68, %c0_69] : memref<24x128xf32, #tpu.memory_space<vmem>>, vector<16x128xf32>
    tpu.vector_store %arg17[%c0_68, %c0_69], %142 {strides = array<i32>} : memref<24x128xf32, #tpu.memory_space<vmem>>, vector<16x128xf32>,
    %cst_70 = arith.constant 0.000000e+00 : f32
    %144 = vector.broadcast %cst_70 : f32 to vector<6x16xf32>
    %145 = tpu.concatenate %106, %110, %144 in 0 : vector<1x16xf32>, vector<1x16xf32>, vector<6x16xf32> -> vector<8x16xf32>
    %cst_71 = arith.constant 0.000000e+00 : f32
    %146 = vector.broadcast %cst_71 : f32 to vector<8x112xf32>
    %147 = tpu.concatenate %145, %146 in 1 : vector<8x16xf32>, vector<8x112xf32> -> vector<8x128xf32>
    %c16 = arith.constant 16 : index
    %c0_72 = arith.constant 0 : index
    %148 = vector.load %arg17[%c16, %c0_72] : memref<24x128xf32, #tpu.memory_space<vmem>>, vector<8x128xf32>
    tpu.vector_store %arg17[%c16, %c0_72], %147 {strides = array<i32>} : memref<24x128xf32, #tpu.memory_space<vmem>>, vector<8x128xf32>,
    return
  }
  func.func @transform_0(%arg0: i32) -> (i32, i32) {
    %c0_i32 = arith.constant 0 : i32
    %c0_i32_0 = arith.constant 0 : i32
    %c0_i32_1 = arith.constant 0 : i32
    return %c0_i32, %c0_i32_0 : i32, i32
  }
  func.func @transform_1(%arg0: i32) -> (i32, i32) {
    %c0_i32 = arith.constant 0 : i32
    %c0_i32_0 = arith.constant 0 : i32
    %c0_i32_1 = arith.constant 0 : i32
    return %c0_i32, %c0_i32_0 : i32, i32
  }
  func.func @transform_2(%arg0: i32) -> (i32, i32) {
    %c0_i32 = arith.constant 0 : i32
    %c0_i32_0 = arith.constant 0 : i32
    %c0_i32_1 = arith.constant 0 : i32
    return %c0_i32, %c0_i32_0 : i32, i32
  }
  func.func @transform_3(%arg0: i32) -> (i32, i32) {
    %c0_i32 = arith.constant 0 : i32
    %c0_i32_0 = arith.constant 0 : i32
    %c0_i32_1 = arith.constant 0 : i32
    return %c0_i32, %c0_i32_0 : i32, i32
  }
  func.func @transform_4(%arg0: i32) -> (i32, i32) {
    %c0_i32 = arith.constant 0 : i32
    %c0_i32_0 = arith.constant 0 : i32
    %c0_i32_1 = arith.constant 0 : i32
    return %c0_i32, %c0_i32_0 : i32, i32
  }
  func.func @transform_5(%arg0: i32) -> (i32, i32) {
    %c0_i32 = arith.constant 0 : i32
    %c0_i32_0 = arith.constant 0 : i32
    %c0_i32_1 = arith.constant 0 : i32
    return %c0_i32, %c0_i32_0 : i32, i32
  }
  func.func @transform_6(%arg0: i32) -> (i32, i32) {
    %c0_i32 = arith.constant 0 : i32
    %c0_i32_0 = arith.constant 0 : i32
    %c0_i32_1 = arith.constant 0 : i32
    return %c0_i32, %c0_i32_0 : i32, i32
  }
  func.func @transform_7(%arg0: i32) -> (i32, i32) {
    %c0_i32 = arith.constant 0 : i32
    %c0_i32_0 = arith.constant 0 : i32
    %c0_i32_1 = arith.constant 0 : i32
    return %c0_i32, %c0_i32_0 : i32, i32
  }
  func.func @transform_8(%arg0: i32) -> (i32, i32) {
    %c0_i32 = arith.constant 0 : i32
    %c0_i32_0 = arith.constant 0 : i32
    %c0_i32_1 = arith.constant 0 : i32
    return %c0_i32, %c0_i32_0 : i32, i32
  }
  func.func @transform_9(%arg0: i32) -> (i32, i32) {
    %c0_i32 = arith.constant 0 : i32
    %c0_i32_0 = arith.constant 0 : i32
    %c0_i32_1 = arith.constant 0 : i32
    return %c0_i32, %c0_i32_0 : i32, i32
  }
  func.func @transform_10(%arg0: i32) -> (i32, i32) {
    %c0_i32 = arith.constant 0 : i32
    %c0_i32_0 = arith.constant 0 : i32
    %c0_i32_1 = arith.constant 0 : i32
    return %c0_i32, %c0_i32_0 : i32, i32
  }
  func.func @transform_11(%arg0: i32) -> (i32, i32) {
    %c0_i32 = arith.constant 0 : i32
    %c0_i32_0 = arith.constant 0 : i32
    %c0_i32_1 = arith.constant 0 : i32
    return %c0_i32, %c0_i32_0 : i32, i32
  }
  func.func @transform_12(%arg0: i32) -> (i32, i32) {
    %c0_i32 = arith.constant 0 : i32
    %c0_i32_0 = arith.constant 0 : i32
    %c0_i32_1 = arith.constant 0 : i32
    return %c0_i32, %c0_i32_0 : i32, i32
  }
  func.func @transform_13(%arg0: i32) -> (i32, i32) {
    %c0_i32 = arith.constant 0 : i32
    %c0_i32_0 = arith.constant 0 : i32
    %c0_i32_1 = arith.constant 0 : i32
    return %c0_i32, %c0_i32_0 : i32, i32
  }
  func.func @transform_14(%arg0: i32) -> (i32, i32) {
    %c0_i32 = arith.constant 0 : i32
    %c0_i32_0 = arith.constant 0 : i32
    %c0_i32_1 = arith.constant 0 : i32
    return %c0_i32, %c0_i32_0 : i32, i32
  }
  func.func @transform_15(%arg0: i32) -> (i32, i32) {
    %c0_i32 = arith.constant 0 : i32
    %c0_i32_0 = arith.constant 0 : i32
    %c0_i32_1 = arith.constant 0 : i32
    return %c0_i32, %c0_i32_0 : i32, i32
  }
  func.func @transform_16(%arg0: i32) -> (i32, i32) {
    %c0_i32 = arith.constant 0 : i32
    %c0_i32_0 = arith.constant 0 : i32
    %c0_i32_1 = arith.constant 0 : i32
    return %c0_i32, %c0_i32_0 : i32, i32
  }
}

</mosaic_0001>

<llo_original>
// kernel: food_model_forward.1
$region0: #{food_model_forward.1}
  #allocation0 [shape = 'u32[]', space=smem, size = 0x4, offset = 0x4, fixed_abs, tag = 'smem constant byte address 0x4 - core index']
  #allocation1 [shape = 'u32[72,128]{1,0:T(1,128)}', space=vmem, size = 0x9000, scoped, tag = 'internal scratch']
  %s0 = inlined_call_operand.vmem [shape: bf16[8,768], index: 0, kind: input, shape index: {}]
  %s1 = inlined_call_operand.vmem [shape: bf16[8,32], index: 1, kind: input, shape index: {}]
  %s2 = inlined_call_operand.vmem [shape: bf16[768,128], index: 2, kind: input, shape index: {}]
  %s3 = inlined_call_operand.vmem [shape: f32[1,128], index: 3, kind: input, shape index: {}]
  %s4 = inlined_call_operand.vmem [shape: bf16[32,128], index: 4, kind: input, shape index: {}]
  %s5 = inlined_call_operand.vmem [shape: f32[1,128], index: 5, kind: input, shape index: {}]
  %s6 = inlined_call_operand.vmem [shape: f32[128,32], index: 6, kind: input, shape index: {}]
  %s7 = inlined_call_operand.vmem [shape: f32[16,512], index: 7, kind: input, shape index: {}]
  %s8 = inlined_call_operand.vmem [shape: bf16[128,512], index: 8, kind: input, shape index: {}]
  %s9 = inlined_call_operand.vmem [shape: f32[1,512], index: 9, kind: input, shape index: {}]
  %s10 = inlined_call_operand.vmem [shape: bf16[512,128], index: 10, kind: input, shape index: {}]
  %s11 = inlined_call_operand.vmem [shape: f32[16,128], index: 11, kind: input, shape index: {}]
  %s12 = inlined_call_operand.vmem [shape: bf16[128,128], index: 12, kind: input, shape index: {}]
  %s13 = inlined_call_operand.vmem [shape: f32[1,128], index: 13, kind: input, shape index: {}]
  %s14 = inlined_call_operand.vmem [shape: f32[8,128], index: 14, kind: output, shape index: {0}]
  %s15 = inlined_call_operand.vmem [shape: f32[16,128], index: 15, kind: output, shape index: {1}]
  %s16 = inlined_call_operand.vmem [shape: f32[24,128], index: 16, kind: output, shape index: {2}]
  %17 = xla_tuple %s14, %s15, %s16
  %s18 = sld [smem:[#allocation0]]
  $region82: #{food_model_forward.1} parent=0
    _
  %s20 = ssub.s32 1, %s18
  %s21 = scalar_select 0, %s20, %s18
  // Predicated region
  $region2: #{food_model_forward.1} parent=0 // pred_check
    _
  $region3: #{food_model_forward.1} parent=0 // pred_check_branch
    %23 = sbr.rel (0) target = $region5
  $region4: #{food_model_forward.1} parent=0 // pred_region
    _
  $region5: #{food_model_forward.1} parent=0 // pred_fallthru
    _
  // Predicated region
  $region6: #{food_model_forward.1} parent=0 // pred_check
    _
  $region7: #{food_model_forward.1} parent=0 // pred_check_branch
    %25 = sbr.rel (0) target = $region9
  $region8: #{food_model_forward.1} parent=0 // pred_region
    _
  $region9: #{food_model_forward.1} parent=0 // pred_fallthru
    _
  // Predicated region
  $region10: #{food_model_forward.1} parent=0 // pred_check
    _
  $region11: #{food_model_forward.1} parent=0 // pred_check_branch
    %27 = sbr.rel (0) target = $region13
  $region12: #{food_model_forward.1} parent=0 // pred_region
    _
  $region13: #{food_model_forward.1} parent=0 // pred_fallthru
    _
  // Predicated region
  $region14: #{food_model_forward.1} parent=0 // pred_check
    _
  $region15: #{food_model_forward.1} parent=0 // pred_check_branch
    %29 = sbr.rel (0) target = $region17
  $region16: #{food_model_forward.1} parent=0 // pred_region
    _
  $region17: #{food_model_forward.1} parent=0 // pred_fallthru
    _
  // Predicated region
  $region18: #{food_model_forward.1} parent=0 // pred_check
    _
  $region19: #{food_model_forward.1} parent=0 // pred_check_branch
    %31 = sbr.rel (0) target = $region21
  $region20: #{food_model_forward.1} parent=0 // pred_region
    _
  $region21: #{food_model_forward.1} parent=0 // pred_fallthru
    _
  // Predicated region
  $region22: #{food_model_forward.1} parent=0 // pred_check
    _
  $region23: #{food_model_forward.1} parent=0 // pred_check_branch
    %33 = sbr.rel (0) target = $region25
  $region24: #{food_model_forward.1} parent=0 // pred_region
    _
  $region25: #{food_model_forward.1} parent=0 // pred_fallthru
    _
  // Predicated region
  $region26: #{food_model_forward.1} parent=0 // pred_check
    _
  $region27: #{food_model_forward.1} parent=0 // pred_check_branch
    %35 = sbr.rel (0) target = $region29
  $region28: #{food_model_forward.1} parent=0 // pred_region
    _
  $region29: #{food_model_forward.1} parent=0 // pred_fallthru
    _
  // Predicated region
  $region30: #{food_model_forward.1} parent=0 // pred_check
    _
  $region31: #{food_model_forward.1} parent=0 // pred_check_branch
    %37 = sbr.rel (0) target = $region33
  $region32: #{food_model_forward.1} parent=0 // pred_region
    _
  $region33: #{food_model_forward.1} parent=0 // pred_fallthru
    _
  // Predicated region
  $region34: #{food_model_forward.1} parent=0 // pred_check
    _
  $region35: #{food_model_forward.1} parent=0 // pred_check_branch
    %39 = sbr.rel (0) target = $region37
  $region36: #{food_model_forward.1} parent=0 // pred_region
    _
  $region37: #{food_model_forward.1} parent=0 // pred_fallthru
    _
  // Predicated region
  $region38: #{food_model_forward.1} parent=0 // pred_check
    _
  $region39: #{food_model_forward.1} parent=0 // pred_check_branch
    %41 = sbr.rel (0) target = $region41
  $region40: #{food_model_forward.1} parent=0 // pred_region
    _
  $region41: #{food_model_forward.1} parent=0 // pred_fallthru
    _
  // Predicated region
  $region42: #{food_model_forward.1} parent=0 // pred_check
    _
  $region43: #{food_model_forward.1} parent=0 // pred_check_branch
    %43 = sbr.rel (0) target = $region45
  $region44: #{food_model_forward.1} parent=0 // pred_region
    _
  $region45: #{food_model_forward.1} parent=0 // pred_fallthru
    _
  // Predicated region
  $region46: #{food_model_forward.1} parent=0 // pred_check
    _
  $region47: #{food_model_forward.1} parent=0 // pred_check_branch
    %45 = sbr.rel (0) target = $region49
  $region48: #{food_model_forward.1} parent=0 // pred_region
    _
  $region49: #{food_model_forward.1} parent=0 // pred_fallthru
    _
  // Predicated region
  $region50: #{food_model_forward.1} parent=0 // pred_check
    _
  $region51: #{food_model_forward.1} parent=0 // pred_check_branch
    %47 = sbr.rel (0) target = $region53
  $region52: #{food_model_forward.1} parent=0 // pred_region
    _
  $region53: #{food_model_forward.1} parent=0 // pred_fallthru
    _
  // Predicated region
  $region54: #{food_model_forward.1} parent=0 // pred_check
    _
  $region55: #{food_model_forward.1} parent=0 // pred_check_branch
    %49 = sbr.rel (0) target = $region57
  $region56: #{food_model_forward.1} parent=0 // pred_region
    _
  $region57: #{food_model_forward.1} parent=0 // pred_fallthru
    _
  %v51 = vld [vmem:[%s0] sm:$0xff]
  %v52 = vld [vmem:[%s0 + $0x8] sm:$0xff]
  %v53 = vld [vmem:[%s0 + $0x10] sm:$0xff]
  %v54 = vld [vmem:[%s2] sm:$0xf]
  %v55 = vld [vmem:[%s2 + $0x4] sm:$0xf]
  %v56 = vld [vmem:[%s2 + $0x8] sm:$0xf]
  %v57 = vld [vmem:[%s2 + $0xc] sm:$0xf]
  %v58 = vld [vmem:[%s2 + $0x10] sm:$0xf]
  %v59 = vld [vmem:[%s2 + $0x14] sm:$0xf]
  %v60 = vld [vmem:[%s2 + $0x18] sm:$0xf]
  %v61 = vld [vmem:[%s2 + $0x1c] sm:$0xf]
  %v62 = vld [vmem:[%s2 + $0x20] sm:$0xf]
  %v63 = vld [vmem:[%s2 + $0x24] sm:$0xf]
  %v64 = vld [vmem:[%s2 + $0x28] sm:$0xf]
  %v65 = vld [vmem:[%s2 + $0x2c] sm:$0xf]
  %v66 = vld [vmem:[%s2 + $0x30] sm:$0xf]
  %v67 = vld [vmem:[%s2 + $0x34] sm:$0xf]
  %v68 = vld [vmem:[%s2 + $0x38] sm:$0xf]
  %v69 = vld [vmem:[%s2 + $0x3c] sm:$0xf]
  %v70 = vld [vmem:[%s2 + $0x40] sm:$0xf]
  %v71 = vld [vmem:[%s2 + $0x44] sm:$0xf]
  %v72 = vld [vmem:[%s2 + $0x48] sm:$0xf]
  %v73 = vld [vmem:[%s2 + $0x4c] sm:$0xf]
  %v74 = vld [vmem:[%s2 + $0x50] sm:$0xf]
  %v75 = vld [vmem:[%s2 + $0x54] sm:$0xf]
  %v76 = vld [vmem:[%s2 + $0x58] sm:$0xf]
  %v77 = vld [vmem:[%s2 + $0x5c] sm:$0xf]
  %v78 = vld [vmem:[%s2 + $0x60] sm:$0xf]
  %v79 = vld [vmem:[%s2 + $0x64] sm:$0xf]
  %v80 = vld [vmem:[%s2 + $0x68] sm:$0xf]
  %v81 = vld [vmem:[%s2 + $0x6c] sm:$0xf]
  %v82 = vld [vmem:[%s2 + $0x70] sm:$0xf]
  %v83 = vld [vmem:[%s2 + $0x74] sm:$0xf]
  %v84 = vld [vmem:[%s2 + $0x78] sm:$0xf]
  %v85 = vld [vmem:[%s2 + $0x7c] sm:$0xf]
  %v86 = vld [vmem:[%s2 + $0x80] sm:$0xf]
  %v87 = vld [vmem:[%s2 + $0x84] sm:$0xf]
  %v88 = vld [vmem:[%s2 + $0x88] sm:$0xf]
  %v89 = vld [vmem:[%s2 + $0x8c] sm:$0xf]
  %v90 = vld [vmem:[%s2 + $0x90] sm:$0xf]
  %v91 = vld [vmem:[%s2 + $0x94] sm:$0xf]
  %v92 = vld [vmem:[%s2 + $0x98] sm:$0xf]
  %v93 = vld [vmem:[%s2 + $0x9c] sm:$0xf]
  %v94 = vld [vmem:[%s2 + $0xa0] sm:$0xf]
  %v95 = vld [vmem:[%s2 + $0xa4] sm:$0xf]
  %v96 = vld [vmem:[%s2 + $0xa8] sm:$0xf]
  %v97 = vld [vmem:[%s2 + $0xac] sm:$0xf]
  %v98 = vld [vmem:[%s2 + $0xb0] sm:$0xf]
  %v99 = vld [vmem:[%s2 + $0xb4] sm:$0xf]
  %v100 = vld [vmem:[%s2 + $0xb8] sm:$0xf]
  %v101 = vld [vmem:[%s2 + $0xbc] sm:$0xf]
  %v102 = vld [vmem:[%s2 + $0xc0] sm:$0xf]
  %v103 = vld [vmem:[%s2 + $0xc4] sm:$0xf]
  %v104 = vld [vmem:[%s2 + $0xc8] sm:$0xf]
  %v105 = vld [vmem:[%s2 + $0xcc] sm:$0xf]
  %v106 = vld [vmem:[%s2 + $0xd0] sm:$0xf]
  %v107 = vld [vmem:[%s2 + $0xd4] sm:$0xf]
  %v108 = vld [vmem:[%s2 + $0xd8] sm:$0xf]
  %v109 = vld [vmem:[%s2 + $0xdc] sm:$0xf]
  %v110 = vld [vmem:[%s2 + $0xe0] sm:$0xf]
  %v111 = vld [vmem:[%s2 + $0xe4] sm:$0xf]
  %v112 = vld [vmem:[%s2 + $0xe8] sm:$0xf]
  %v113 = vld [vmem:[%s2 + $0xec] sm:$0xf]
  %v114 = vld [vmem:[%s2 + $0xf0] sm:$0xf]
  %v115 = vld [vmem:[%s2 + $0xf4] sm:$0xf]
  %v116 = vld [vmem:[%s2 + $0xf8] sm:$0xf]
  %v117 = vld [vmem:[%s2 + $0xfc] sm:$0xf]
  %v118 = vld [vmem:[%s2 + $0x100] sm:$0xf]
  %v119 = vld [vmem:[%s2 + $0x104] sm:$0xf]
  %v120 = vld [vmem:[%s2 + $0x108] sm:$0xf]
  %v121 = vld [vmem:[%s2 + $0x10c] sm:$0xf]
  %v122 = vld [vmem:[%s2 + $0x110] sm:$0xf]
  %v123 = vld [vmem:[%s2 + $0x114] sm:$0xf]
  %v124 = vld [vmem:[%s2 + $0x118] sm:$0xf]
  %v125 = vld [vmem:[%s2 + $0x11c] sm:$0xf]
  %v126 = vld [vmem:[%s2 + $0x120] sm:$0xf]
  %v127 = vld [vmem:[%s2 + $0x124] sm:$0xf]
  %v128 = vld [vmem:[%s2 + $0x128] sm:$0xf]
  %v129 = vld [vmem:[%s2 + $0x12c] sm:$0xf]
  %v130 = vld [vmem:[%s2 + $0x130] sm:$0xf]
  %v131 = vld [vmem:[%s2 + $0x134] sm:$0xf]
  %v132 = vld [vmem:[%s2 + $0x138] sm:$0xf]
  %v133 = vld [vmem:[%s2 + $0x13c] sm:$0xf]
  %v134 = vld [vmem:[%s2 + $0x140] sm:$0xf]
  %v135 = vld [vmem:[%s2 + $0x144] sm:$0xf]
  %v136 = vld [vmem:[%s2 + $0x148] sm:$0xf]
  %v137 = vld [vmem:[%s2 + $0x14c] sm:$0xf]
  %v138 = vld [vmem:[%s2 + $0x150] sm:$0xf]
  %v139 = vld [vmem:[%s2 + $0x154] sm:$0xf]
  %v140 = vld [vmem:[%s2 + $0x158] sm:$0xf]
  %v141 = vld [vmem:[%s2 + $0x15c] sm:$0xf]
  %v142 = vld [vmem:[%s2 + $0x160] sm:$0xf]
  %v143 = vld [vmem:[%s2 + $0x164] sm:$0xf]
  %v144 = vld [vmem:[%s2 + $0x168] sm:$0xf]
  %v145 = vld [vmem:[%s2 + $0x16c] sm:$0xf]
  %v146 = vld [vmem:[%s2 + $0x170] sm:$0xf]
  %v147 = vld [vmem:[%s2 + $0x174] sm:$0xf]
  %v148 = vld [vmem:[%s2 + $0x178] sm:$0xf]
  %v149 = vld [vmem:[%s2 + $0x17c] sm:$0xf]
  %v150 = vld [vmem:[%s3] sm:$0x1]
  %v152 = vperm.slane %v150, 0
  %v157 = vunpack.c.l.b16 %v51
  %v158 = vunpack.c.h.b16 %v51
  %v159 = vunpack.c.l.b16 %v52
  %v160 = vunpack.c.h.b16 %v52
  %v161 = vunpack.c.l.b16 %v53
  %v162 = vunpack.c.h.b16 %v53
  %v163 = vpack.c.b16 %v157, %v157
  %v164 = vpack.c.b16 %v158, %v158
  %v165 = vpack.c.b16 %v159, %v159
  %v166 = vpack.c.b16 %v160, %v160
  %v167 = vpack.c.b16 %v161, %v161
  %v168 = vpack.c.b16 %v162, %v162
  %v271 = vunpack.c.l.b16 %v54
  %v272 = vunpack.c.l.b16 %v55
  %v273 = vunpack.c.l.b16 %v56
  %v274 = vunpack.c.l.b16 %v57
  %v275 = vunpack.c.l.b16 %v58
  %v276 = vunpack.c.l.b16 %v59
  %v277 = vunpack.c.l.b16 %v60
  %v278 = vunpack.c.l.b16 %v61
  %v279 = vunpack.c.l.b16 %v62
  %v280 = vunpack.c.l.b16 %v63
  %v281 = vunpack.c.l.b16 %v64
  %v282 = vunpack.c.l.b16 %v65
  %v283 = vunpack.c.l.b16 %v66
  %v284 = vunpack.c.l.b16 %v67
  %v285 = vunpack.c.l.b16 %v68
  %v286 = vunpack.c.l.b16 %v69
  %v287 = vunpack.c.l.b16 %v70
  %v288 = vunpack.c.l.b16 %v71
  %v289 = vunpack.c.l.b16 %v72
  %v290 = vunpack.c.l.b16 %v73
  %v291 = vunpack.c.l.b16 %v74
  %v292 = vunpack.c.l.b16 %v75
  %v293 = vunpack.c.l.b16 %v76
  %v294 = vunpack.c.l.b16 %v77
  %v295 = vunpack.c.l.b16 %v78
  %v296 = vunpack.c.l.b16 %v79
  %v297 = vunpack.c.l.b16 %v80
  %v298 = vunpack.c.l.b16 %v81
  %v299 = vunpack.c.l.b16 %v82
  %v300 = vunpack.c.l.b16 %v83
  %v301 = vunpack.c.l.b16 %v84
  %v302 = vunpack.c.l.b16 %v85
  %v303 = vunpack.c.l.b16 %v86
  %v304 = vunpack.c.l.b16 %v87
  %v305 = vunpack.c.l.b16 %v88
  %v306 = vunpack.c.l.b16 %v89
  %v307 = vunpack.c.l.b16 %v90
  %v308 = vunpack.c.l.b16 %v91
  %v309 = vunpack.c.l.b16 %v92
  %v310 = vunpack.c.l.b16 %v93
  %v311 = vunpack.c.l.b16 %v94
  %v312 = vunpack.c.l.b16 %v95
  %v313 = vunpack.c.l.b16 %v96
  %v314 = vunpack.c.l.b16 %v97
  %v315 = vunpack.c.l.b16 %v98
  %v316 = vunpack.c.l.b16 %v99
  %v317 = vunpack.c.l.b16 %v100
  %v318 = vunpack.c.l.b16 %v101
  %v319 = vunpack.c.l.b16 %v102
  %v320 = vunpack.c.l.b16 %v103
  %v321 = vunpack.c.l.b16 %v104
  %v322 = vunpack.c.l.b16 %v105
  %v323 = vunpack.c.l.b16 %v106
  %v324 = vunpack.c.l.b16 %v107
  %v325 = vunpack.c.l.b16 %v108
  %v326 = vunpack.c.l.b16 %v109
  %v327 = vunpack.c.l.b16 %v110
  %v328 = vunpack.c.l.b16 %v111
  %v329 = vunpack.c.l.b16 %v112
  %v330 = vunpack.c.l.b16 %v113
  %v331 = vunpack.c.l.b16 %v114
  %v332 = vunpack.c.l.b16 %v115
  %v333 = vunpack.c.l.b16 %v116
  %v334 = vunpack.c.l.b16 %v117
  %v335 = vunpack.c.l.b16 %v118
  %v336 = vunpack.c.l.b16 %v119
  %v337 = vunpack.c.l.b16 %v120
  %v338 = vunpack.c.l.b16 %v121
  %v339 = vunpack.c.l.b16 %v122
  %v340 = vunpack.c.l.b16 %v123
  %v341 = vunpack.c.l.b16 %v124
  %v342 = vunpack.c.l.b16 %v125
  %v343 = vunpack.c.l.b16 %v126
  %v344 = vunpack.c.l.b16 %v127
  %v345 = vunpack.c.l.b16 %v128
  %v346 = vunpack.c.l.b16 %v129
  %v347 = vunpack.c.l.b16 %v130
  %v348 = vunpack.c.l.b16 %v131
  %v349 = vunpack.c.l.b16 %v132
  %v350 = vunpack.c.l.b16 %v133
  %v351 = vunpack.c.l.b16 %v134
  %v352 = vunpack.c.l.b16 %v135
  %v353 = vunpack.c.l.b16 %v136
  %v354 = vunpack.c.l.b16 %v137
  %v355 = vunpack.c.l.b16 %v138
  %v356 = vunpack.c.l.b16 %v139
  %v357 = vunpack.c.l.b16 %v140
  %v358 = vunpack.c.l.b16 %v141
  %v359 = vunpack.c.l.b16 %v142
  %v360 = vunpack.c.l.b16 %v143
  %v361 = vunpack.c.l.b16 %v144
  %v362 = vunpack.c.l.b16 %v145
  %v363 = vunpack.c.l.b16 %v146
  %v364 = vunpack.c.l.b16 %v147
  %v365 = vunpack.c.l.b16 %v148
  %v366 = vunpack.c.l.b16 %v149
  %v367 = vpack.c.b16 %v272, %v271
  %v368 = vpack.c.b16 %v274, %v273
  %v369 = vpack.c.b16 %v276, %v275
  %v370 = vpack.c.b16 %v278, %v277
  %v371 = vpack.c.b16 %v280, %v279
  %v372 = vpack.c.b16 %v282, %v281
  %v373 = vpack.c.b16 %v284, %v283
  %v374 = vpack.c.b16 %v286, %v285
  %v375 = vpack.c.b16 %v288, %v287
  %v376 = vpack.c.b16 %v290, %v289
  %v377 = vpack.c.b16 %v292, %v291
  %v378 = vpack.c.b16 %v294, %v293
  %v379 = vpack.c.b16 %v296, %v295
  %v380 = vpack.c.b16 %v298, %v297
  %v381 = vpack.c.b16 %v300, %v299
  %v382 = vpack.c.b16 %v302, %v301
  %v383 = vpack.c.b16 %v304, %v303
  %v384 = vpack.c.b16 %v306, %v305
  %v385 = vpack.c.b16 %v308, %v307
  %v386 = vpack.c.b16 %v310, %v309
  %v387 = vpack.c.b16 %v312, %v311
  %v388 = vpack.c.b16 %v314, %v313
  %v389 = vpack.c.b16 %v316, %v315
  %v390 = vpack.c.b16 %v318, %v317
  %v391 = vpack.c.b16 %v320, %v319
  %v392 = vpack.c.b16 %v322, %v321
  %v393 = vpack.c.b16 %v324, %v323
  %v394 = vpack.c.b16 %v326, %v325
  %v395 = vpack.c.b16 %v328, %v327
  %v396 = vpack.c.b16 %v330, %v329
  %v397 = vpack.c.b16 %v332, %v331
  %v398 = vpack.c.b16 %v334, %v333
  %v399 = vpack.c.b16 %v336, %v335
  %v400 = vpack.c.b16 %v338, %v337
  %v401 = vpack.c.b16 %v340, %v339
  %v402 = vpack.c.b16 %v342, %v341
  %v403 = vpack.c.b16 %v344, %v343
  %v404 = vpack.c.b16 %v346, %v345
  %v405 = vpack.c.b16 %v348, %v347
  %v406 = vpack.c.b16 %v350, %v349
  %v407 = vpack.c.b16 %v352, %v351
  %v408 = vpack.c.b16 %v354, %v353
  %v409 = vpack.c.b16 %v356, %v355
  %v410 = vpack.c.b16 %v358, %v357
  %v411 = vpack.c.b16 %v360, %v359
  %v412 = vpack.c.b16 %v362, %v361
  %v413 = vpack.c.b16 %v364, %v363
  %v414 = vpack.c.b16 %v366, %v365
  %463 = vmatpush.bf16.msra.mxu0 %v374
  %464 = vmatpush.bf16.msra.mxu0 %v373
  %465 = vmatpush.bf16.msra.mxu0 %v372
  %466 = vmatpush.bf16.msra.mxu0 %v371
  %467 = vmatpush.bf16.msra.mxu0 %v370
  %468 = vmatpush.bf16.msra.mxu0 %v369
  %469 = vmatpush.bf16.msra.mxu0 %v368
  %470 = vmatpush.bf16.msra.mxu0 %v367
  %471 = vmatmul.bf16.gmra.mxu0 %v163
  %v472 = vpop.f32.mrf.mxu0
  %v473 = vadd.f32 %v152, %v472
  %v474 = vpop.f32.mrf.mxu0
  %475 = vdwg.mxu0
  %476 = vmatpush.bf16.msra.mxu0 %v382
  %477 = vmatpush.bf16.msra.mxu0 %v381
  %478 = vmatpush.bf16.msra.mxu0 %v380
  %479 = vmatpush.bf16.msra.mxu0 %v379
  %480 = vmatpush.bf16.msra.mxu0 %v378
  %481 = vmatpush.bf16.msra.mxu0 %v377
  %482 = vmatpush.bf16.msra.mxu0 %v376
  %483 = vmatpush.bf16.msra.mxu0 %v375
  %484 = vmatmul.bf16.gmra.mxu0 %v164
  %v485 = vpop.f32.mrf.mxu0
  %v486 = vadd.f32 %v473, %v485
  %v487 = vpop.f32.mrf.mxu0
  %488 = vdwg.mxu0
  %489 = vmatpush.bf16.msra.mxu0 %v390
  %490 = vmatpush.bf16.msra.mxu0 %v389
  %491 = vmatpush.bf16.msra.mxu0 %v388
  %492 = vmatpush.bf16.msra.mxu0 %v387
  %493 = vmatpush.bf16.msra.mxu0 %v386
  %494 = vmatpush.bf16.msra.mxu0 %v385
  %495 = vmatpush.bf16.msra.mxu0 %v384
  %496 = vmatpush.bf16.msra.mxu0 %v383
  %497 = vmatmul.bf16.gmra.mxu0 %v165
  %v498 = vpop.f32.mrf.mxu0
  %v499 = vadd.f32 %v486, %v498
  %v500 = vpop.f32.mrf.mxu0
  %501 = vdwg.mxu0
  %502 = vmatpush.bf16.msra.mxu0 %v398
  %503 = vmatpush.bf16.msra.mxu0 %v397
  %504 = vmatpush.bf16.msra.mxu0 %v396
  %505 = vmatpush.bf16.msra.mxu0 %v395
  %506 = vmatpush.bf16.msra.mxu0 %v394
  %507 = vmatpush.bf16.msra.mxu0 %v393
  %508 = vmatpush.bf16.msra.mxu0 %v392
  %509 = vmatpush.bf16.msra.mxu0 %v391
  %510 = vmatmul.bf16.gmra.mxu0 %v166
  %v511 = vpop.f32.mrf.mxu0
  %v512 = vadd.f32 %v499, %v511
  %v513 = vpop.f32.mrf.mxu0
  %514 = vdwg.mxu0
  %515 = vmatpush.bf16.msra.mxu0 %v406
  %516 = vmatpush.bf16.msra.mxu0 %v405
  %517 = vmatpush.bf16.msra.mxu0 %v404
  %518 = vmatpush.bf16.msra.mxu0 %v403
  %519 = vmatpush.bf16.msra.mxu0 %v402
  %520 = vmatpush.bf16.msra.mxu0 %v401
  %521 = vmatpush.bf16.msra.mxu0 %v400
  %522 = vmatpush.bf16.msra.mxu0 %v399
  %523 = vmatmul.bf16.gmra.mxu0 %v167
  %v524 = vpop.f32.mrf.mxu0
  %v525 = vadd.f32 %v512, %v524
  %v526 = vpop.f32.mrf.mxu0
  %527 = vdwg.mxu0
  %528 = vmatpush.bf16.msra.mxu0 %v414
  %529 = vmatpush.bf16.msra.mxu0 %v413
  %530 = vmatpush.bf16.msra.mxu0 %v412
  %531 = vmatpush.bf16.msra.mxu0 %v411
  %532 = vmatpush.bf16.msra.mxu0 %v410
  %533 = vmatpush.bf16.msra.mxu0 %v409
  %534 = vmatpush.bf16.msra.mxu0 %v408
  %535 = vmatpush.bf16.msra.mxu0 %v407
  %536 = vmatmul.bf16.gmra.mxu0 %v168
  %v537 = vpop.f32.mrf.mxu0
  %v538 = vadd.f32 %v525, %v537
  %v539 = vpop.f32.mrf.mxu0
  %540 = vdwg.mxu0
  %v541 = vtanh.pop %v538
  %v542 = vld [vmem:[%s1] sm:$0xf]
  %v543 = vld [vmem:[%s4] sm:$0xf]
  %v544 = vld [vmem:[%s4 + $0x4] sm:$0xf]
  %v545 = vld [vmem:[%s4 + $0x8] sm:$0xf]
  %v546 = vld [vmem:[%s4 + $0xc] sm:$0xf]
  %v547 = vld [vmem:[%s5] sm:$0x1]
  %v549 = vperm.slane %v547, 0
  %v555 = vunpack.c.l.b16 %v543
  %v556 = vunpack.c.l.b16 %v544
  %v557 = vunpack.c.l.b16 %v545
  %v558 = vunpack.c.l.b16 %v546
  %v559 = vpack.c.b16 %v556, %v555
  %v560 = vpack.c.b16 %v558, %v557
  %vm563 = vcmask 261120
  %v565 = vsel %vm563, %v542, 0
  %567 = vmatpush.bf16.msra.mxu0 0
  %568 = vmatpush.bf16.msra.mxu0 0
  %569 = vmatpush.bf16.msra.mxu0 0
  %570 = vmatpush.bf16.msra.mxu0 0
  %571 = vmatpush.bf16.msra.mxu0 0
  %572 = vmatpush.bf16.msra.mxu0 0
  %573 = vmatpush.bf16.msra.mxu0 %v560
  %574 = vmatpush.bf16.msra.mxu0 %v559
  %575 = vmatmul.bf16.gmra.mxu0 %v565
  %v576 = vpop.f32.mrf.mxu0
  %v577 = vadd.f32 %v549, %v576
  %v578 = vpop.f32.mrf.mxu0
  %579 = vdwg.mxu0
  %v580 = vtanh.pop %v577
  %581 = vst [vmem:[%s15] sm:$0xff] %v541
  %582 = vst [vmem:[%s15 + $0x8] sm:$0xff] %v580
  %v583 = vld [vmem:[%s15] sm:$0xff]
  %v584 = vld [vmem:[%s15 + $0x8] sm:$0xff]
  %v585 = vld [vmem:[%s6] sm:$0xff]
  %v586 = vld [vmem:[%s6 + $0x8] sm:$0xff]
  %v587 = vld [vmem:[%s6 + $0x10] sm:$0xff]
  %v588 = vld [vmem:[%s6 + $0x18] sm:$0xff]
  %v589 = vld [vmem:[%s6 + $0x20] sm:$0xff]
  %v590 = vld [vmem:[%s6 + $0x28] sm:$0xff]
  %v591 = vld [vmem:[%s6 + $0x30] sm:$0xff]
  %v592 = vld [vmem:[%s6 + $0x38] sm:$0xff]
  %v593 = vld [vmem:[%s6 + $0x40] sm:$0xff]
  %v594 = vld [vmem:[%s6 + $0x48] sm:$0xff]
  %v595 = vld [vmem:[%s6 + $0x50] sm:$0xff]
  %v596 = vld [vmem:[%s6 + $0x58] sm:$0xff]
  %v597 = vld [vmem:[%s6 + $0x60] sm:$0xff]
  %v598 = vld [vmem:[%s6 + $0x68] sm:$0xff]
  %v599 = vld [vmem:[%s6 + $0x70] sm:$0xff]
  %v600 = vld [vmem:[%s6 + $0x78] sm:$0xff]
  %601 = vmatpush.msra.mxu0 %v600
  %602 = vmatpush.msra.mxu0 %v599
  %603 = vmatpush.msra.mxu0 %v598
  %604 = vmatpush.msra.mxu0 %v597
  %605 = vmatpush.msra.mxu0 %v596
  %606 = vmatpush.msra.mxu0 %v595
  %607 = vmatpush.msra.mxu0 %v594
  %608 = vmatpush.msra.mxu0 %v593
  %609 = vmatpush.msra.mxu0 %v592
  %610 = vmatpush.msra.mxu0 %v591
  %611 = vmatpush.msra.mxu0 %v590
  %612 = vmatpush.msra.mxu0 %v589
  %613 = vmatpush.msra.mxu0 %v588
  %614 = vmatpush.msra.mxu0 %v587
  %615 = vmatpush.msra.mxu0 %v586
  %616 = vmatpush.msra.mxu0 %v585
  %617 = vmatmul.f32.gmra.mxu0 %v583
  %v618 = vpop.f32.mrf.mxu0
  %v619 = vadd.f32 0.0, %v618
  %620 = vmatmul.f32.gmra.mxu0 %v584
  %v621 = vpop.f32.mrf.mxu0
  %v622 = vadd.f32 0.0, %v621
  %623 = vdwg.mxu0
  %v624 = vlaneseq
  %v625 = vshrl.u32 %v624, 7
  %v626 = vadd.s32 %v625, 8
  %vm627 = vcmp.lt.s32.totalorder %v625, 8
  %vm628 = vcmp.lt.s32.totalorder %v626, 8
  %631 = vrot.lane.b32.xlu0 %v619, 112
  %v632 = vpop.permute.xlu0 %631
  %633 = vrot.lane.b32.xlu0 %v622, 112
  %v634 = vpop.permute.xlu0 %633
  %v637 = vsel %vm627, %v619, %v632
  %v638 = vsel %vm628, %v622, %v634
  %v639 = vlaneseq
  %v640 = vand.u32 %v639, 127
  %vm641 = vcmask 130048
  %v642 = vsel %vm641, %v637, -inf
  %643 = vmax.xlane.f32.xlu0 %v642
  %v644 = vpop.xlane.xlu0 %643
  %v645 = vsel %vm641, %v638, -inf
  %646 = vmax.xlane.f32.xlu0 %v645
  %v647 = vpop.xlane.xlu0 %646
  %vm648 = vcmp.eq.f32.partialorder %v637, %v644
  %vm649 = vcmp.eq.f32.partialorder %v638, %v647
  %v650 = vsel %vm648, %v640, 16
  %v651 = vsel %vm649, %v640, 16
  %v652 = vsel %vm641, %v650, 2147483647
  %v653 = vand.u32 %v652, 65535
  %v654 = vshra.s32 %v652, 16
  %v655 = vcvt.s32.f32 %v653
  %v656 = vcvt.s32.f32 %v654
  %657 = vmin.xlane.f32.xlu0 %v656
  %v658 = vpop.xlane.xlu0 %657
  %vm659 = vcmp.eq.f32.partialorder %v656, %v658
  %v660 = vsel %vm659, %v655, inf
  %661 = vmin.xlane.f32.xlu0 %v660
  %v662 = vpop.xlane.xlu0 %661
  %v663 = vcvt.f32.s32 %v662
  %v664 = vcvt.f32.s32 %v658
  %v665 = vshll.u32 %v664, 16
  %v666 = vadd.s32 %v665, %v663
  %v667 = vsel %vm641, %v651, 2147483647
  %v668 = vand.u32 %v667, 65535
  %v669 = vshra.s32 %v667, 16
  %v670 = vcvt.s32.f32 %v668
  %v671 = vcvt.s32.f32 %v669
  %672 = vmin.xlane.f32.xlu0 %v671
  %v673 = vpop.xlane.xlu0 %672
  %vm674 = vcmp.eq.f32.partialorder %v671, %v673
  %v675 = vsel %vm674, %v670, inf
  %676 = vmin.xlane.f32.xlu0 %v675
  %v677 = vpop.xlane.xlu0 %676
  %v678 = vcvt.f32.s32 %v677
  %v679 = vcvt.f32.s32 %v673
  %v680 = vshll.u32 %v679, 16
  %v681 = vadd.s32 %v680, %v678
  %vm682 = vcmp.eq.s32.totalorder %v640, %v666
  %vm683 = vcmp.eq.s32.totalorder %v640, %v681
  %v684 = vsel %vm682, -1e+30, %v637
  %v685 = vsel %vm683, -1e+30, %v638
  %v686 = vsel %vm641, %v684, -inf
  %687 = vmax.xlane.f32.xlu0 %v686
  %v688 = vpop.xlane.xlu0 %687
  %v689 = vsel %vm641, %v685, -inf
  %690 = vmax.xlane.f32.xlu0 %v689
  %v691 = vpop.xlane.xlu0 %690
  %vm692 = vcmp.eq.f32.partialorder %v684, %v688
  %vm693 = vcmp.eq.f32.partialorder %v685, %v691
  %v694 = vsel %vm692, %v640, 16
  %v695 = vsel %vm693, %v640, 16
  %v696 = vsel %vm641, %v694, 2147483647
  %v697 = vand.u32 %v696, 65535
  %v698 = vshra.s32 %v696, 16
  %v699 = vcvt.s32.f32 %v697
  %v700 = vcvt.s32.f32 %v698
  %701 = vmin.xlane.f32.xlu0 %v700
  %v702 = vpop.xlane.xlu0 %701
  %vm703 = vcmp.eq.f32.partialorder %v700, %v702
  %v704 = vsel %vm703, %v699, inf
  %705 = vmin.xlane.f32.xlu0 %v704
  %v706 = vpop.xlane.xlu0 %705
  %v707 = vcvt.f32.s32 %v706
  %v708 = vcvt.f32.s32 %v702
  %v709 = vshll.u32 %v708, 16
  %v710 = vadd.s32 %v709, %v707
  %v711 = vsel %vm641, %v695, 2147483647
  %v712 = vand.u32 %v711, 65535
  %v713 = vshra.s32 %v711, 16
  %v714 = vcvt.s32.f32 %v712
  %v715 = vcvt.s32.f32 %v713
  %716 = vmin.xlane.f32.xlu0 %v715
  %v717 = vpop.xlane.xlu0 %716
  %vm718 = vcmp.eq.f32.partialorder %v715, %v717
  %v719 = vsel %vm718, %v714, inf
  %720 = vmin.xlane.f32.xlu0 %v719
  %v721 = vpop.xlane.xlu0 %720
  %v722 = vcvt.f32.s32 %v721
  %v723 = vcvt.f32.s32 %v717
  %v724 = vshll.u32 %v723, 16
  %v725 = vadd.s32 %v724, %v722
  %vm726 = vcmp.eq.s32.totalorder %v640, %v710
  %vm727 = vcmp.eq.s32.totalorder %v640, %v725
  %vm728 = vmor %vm682, %vm726
  %vm729 = vmor %vm683, %vm727
  %v730 = vsel %vm726, -1e+30, %v684
  %v731 = vsel %vm727, -1e+30, %v685
  %v732 = vsel %vm641, %v730, -inf
  %733 = vmax.xlane.f32.xlu0 %v732
  %v734 = vpop.xlane.xlu0 %733
  %v735 = vsel %vm641, %v731, -inf
  %736 = vmax.xlane.f32.xlu0 %v735
  %v737 = vpop.xlane.xlu0 %736
  %vm738 = vcmp.eq.f32.partialorder %v730, %v734
  %vm739 = vcmp.eq.f32.partialorder %v731, %v737
  %v740 = vsel %vm738, %v640, 16
  %v741 = vsel %vm739, %v640, 16
  %v742 = vsel %vm641, %v740, 2147483647
  %v743 = vand.u32 %v742, 65535
  %v744 = vshra.s32 %v742, 16
  %v745 = vcvt.s32.f32 %v743
  %v746 = vcvt.s32.f32 %v744
  %747 = vmin.xlane.f32.xlu0 %v746
  %v748 = vpop.xlane.xlu0 %747
  %vm749 = vcmp.eq.f32.partialorder %v746, %v748
  %v750 = vsel %vm749, %v745, inf
  %751 = vmin.xlane.f32.xlu0 %v750
  %v752 = vpop.xlane.xlu0 %751
  %v753 = vcvt.f32.s32 %v752
  %v754 = vcvt.f32.s32 %v748
  %v755 = vshll.u32 %v754, 16
  %v756 = vadd.s32 %v755, %v753
  %v757 = vsel %vm641, %v741, 2147483647
  %v758 = vand.u32 %v757, 65535
  %v759 = vshra.s32 %v757, 16
  %v760 = vcvt.s32.f32 %v758
  %v761 = vcvt.s32.f32 %v759
  %762 = vmin.xlane.f32.xlu0 %v761
  %v763 = vpop.xlane.xlu0 %762
  %vm764 = vcmp.eq.f32.partialorder %v761, %v763
  %v765 = vsel %vm764, %v760, inf
  %766 = vmin.xlane.f32.xlu0 %v765
  %v767 = vpop.xlane.xlu0 %766
  %v768 = vcvt.f32.s32 %v767
  %v769 = vcvt.f32.s32 %v763
  %v770 = vshll.u32 %v769, 16
  %v771 = vadd.s32 %v770, %v768
  %vm772 = vcmp.eq.s32.totalorder %v640, %v756
  %vm773 = vcmp.eq.s32.totalorder %v640, %v771
  %vm774 = vmor %vm728, %vm772
  %vm775 = vmor %vm729, %vm773
  %v776 = vsel %vm772, -1e+30, %v730
  %v777 = vsel %vm773, -1e+30, %v731
  %v778 = vsel %vm641, %v776, -inf
  %779 = vmax.xlane.f32.xlu0 %v778
  %v780 = vpop.xlane.xlu0 %779
  %v781 = vsel %vm641, %v777, -inf
  %782 = vmax.xlane.f32.xlu0 %v781
  %v783 = vpop.xlane.xlu0 %782
  %vm784 = vcmp.eq.f32.partialorder %v776, %v780
  %vm785 = vcmp.eq.f32.partialorder %v777, %v783
  %v786 = vsel %vm784, %v640, 16
  %v787 = vsel %vm785, %v640, 16
  %v788 = vsel %vm641, %v786, 2147483647
  %v789 = vand.u32 %v788, 65535
  %v790 = vshra.s32 %v788, 16
  %v791 = vcvt.s32.f32 %v789
  %v792 = vcvt.s32.f32 %v790
  %793 = vmin.xlane.f32.xlu0 %v792
  %v794 = vpop.xlane.xlu0 %793
  %vm795 = vcmp.eq.f32.partialorder %v792, %v794
  %v796 = vsel %vm795, %v791, inf
  %797 = vmin.xlane.f32.xlu0 %v796
  %v798 = vpop.xlane.xlu0 %797
  %v799 = vcvt.f32.s32 %v798
  %v800 = vcvt.f32.s32 %v794
  %v801 = vshll.u32 %v800, 16
  %v802 = vadd.s32 %v801, %v799
  %v803 = vsel %vm641, %v787, 2147483647
  %v804 = vand.u32 %v803, 65535
  %v805 = vshra.s32 %v803, 16
  %v806 = vcvt.s32.f32 %v804
  %v807 = vcvt.s32.f32 %v805
  %808 = vmin.xlane.f32.xlu0 %v807
  %v809 = vpop.xlane.xlu0 %808
  %vm810 = vcmp.eq.f32.partialorder %v807, %v809
  %v811 = vsel %vm810, %v806, inf
  %812 = vmin.xlane.f32.xlu0 %v811
  %v813 = vpop.xlane.xlu0 %812
  %v814 = vcvt.f32.s32 %v813
  %v815 = vcvt.f32.s32 %v809
  %v816 = vshll.u32 %v815, 16
  %v817 = vadd.s32 %v816, %v814
  %vm818 = vcmp.eq.s32.totalorder %v640, %v802
  %vm819 = vcmp.eq.s32.totalorder %v640, %v817
  %vm820 = vmor %vm774, %vm818
  %vm821 = vmor %vm775, %vm819
  %v822 = vsel %vm820, %v637, -1e+30
  %v823 = vsel %vm821, %v638, -1e+30
  %v824 = vsel %vm641, %v822, -inf
  %825 = vmax.xlane.f32.xlu0 %v824
  %v826 = vpop.xlane.xlu0 %825
  %v827 = vsel %vm641, %v823, -inf
  %828 = vmax.xlane.f32.xlu0 %v827
  %v829 = vpop.xlane.xlu0 %828
  %v830 = vsub.f32 %v637, %v826
  %v831 = vsub.f32 %v638, %v829
  %v832 = vmul.f32 %v830, 1.442695
  %v833 = vpow.pop %v832
  %v834 = vmul.f32 %v831, 1.442695
  %v835 = vpow.pop %v834
  %v836 = vsel %vm820, %v833, 0.0
  %v837 = vsel %vm821, %v835, 0.0
  %v838 = vsel %vm641, %v836, 0.0
  %839 = vadd.xlane.f32.xlu0 %v838
  %v840 = vpop.xlane.xlu0 %839
  %v841 = vsel %vm641, %v837, 0.0
  %842 = vadd.xlane.f32.xlu0 %v841
  %v843 = vpop.xlane.xlu0 %842
  %v844 = vrcp.pop %v840
  %v845 = vrcp.pop %v843
  %v846 = vmul.f32 %v836, %v844
  %v847 = vmul.f32 %v837, %v845
  %vm848 = vcmp.lt.s32.totalorder %v625, 2
  %vm849 = vcmp.lt.s32.totalorder %v626, 2
  %vm850 = vcmp.ge.s32.totalorder %v625, 8
  %vm851 = vcmp.ge.s32.totalorder %v626, 8
  %vm852 = vcmp.lt.s32.totalorder %v625, 10
  %vm853 = vcmp.lt.s32.totalorder %v626, 10
  %vm854 = vmand %vm850, %vm852
  %vm855 = vmand %vm851, %vm853
  %vm856 = vmor %vm848, %vm854
  %vm857 = vmor %vm849, %vm855
  %v858 = vsel %vm820, 1, 0
  %v859 = vsel %vm821, 1, 0
  %v860 = vcvt.s32.f32 %v858
  %v861 = vcvt.s32.f32 %v859
  %v862 = vsel %vm856, %v860, 0.0
  %v863 = vsel %vm857, %v861, 0.0
  %v864 = vsel %vm627, %v862, 0.0
  %v865 = vsel %vm628, %v863, 0.0
  %v866 = vsel %vm641, %v864, 0.0
  %v867 = vsel %vm641, %v865, 0.0
  %v868 = vadd.f32 %v866, %v867
  %v869 = vrot.slane %v868, 4
  %v870 = vadd.f32 %v868, %v869
  %v871 = vrot.slane %v870, 2
  %v872 = vadd.f32 %v870, %v871
  %v873 = vrot.slane %v872, 1
  %v874 = vadd.f32 %v872, %v873
  %v875 = vsel %vm627, 0.0, %v862
  %v876 = vsel %vm628, 0.0, %v863
  %v877 = vsel %vm641, %v875, 0.0
  %v878 = vsel %vm641, %v876, 0.0
  %v879 = vadd.f32 %v877, %v878
  %v880 = vrot.slane %v879, 4
  %v881 = vadd.f32 %v879, %v880
  %v882 = vrot.slane %v881, 2
  %v883 = vadd.f32 %v881, %v882
  %v884 = vrot.slane %v883, 1
  %v885 = vadd.f32 %v883, %v884
  %v886 = vpack.c.bf16 %v584, %v583
  %v887 = vld [vmem:[%s8] sm:$0xff]
  %v888 = vld [vmem:[%s8 + $0x8] sm:$0xff]
  %v889 = vld [vmem:[%s8 + $0x10] sm:$0xff]
  %v890 = vld [vmem:[%s8 + $0x18] sm:$0xff]
  %v891 = vld [vmem:[%s8 + $0x20] sm:$0xff]
  %v892 = vld [vmem:[%s8 + $0x28] sm:$0xff]
  %v893 = vld [vmem:[%s8 + $0x30] sm:$0xff]
  %v894 = vld [vmem:[%s8 + $0x38] sm:$0xff]
  %v895 = vld [vmem:[%s8 + $0x40] sm:$0xff]
  %v896 = vld [vmem:[%s8 + $0x48] sm:$0xff]
  %v897 = vld [vmem:[%s8 + $0x50] sm:$0xff]
  %v898 = vld [vmem:[%s8 + $0x58] sm:$0xff]
  %v899 = vld [vmem:[%s8 + $0x60] sm:$0xff]
  %v900 = vld [vmem:[%s8 + $0x68] sm:$0xff]
  %v901 = vld [vmem:[%s8 + $0x70] sm:$0xff]
  %v902 = vld [vmem:[%s8 + $0x78] sm:$0xff]
  %v903 = vld [vmem:[%s8 + $0x80] sm:$0xff]
  %v904 = vld [vmem:[%s8 + $0x88] sm:$0xff]
  %v905 = vld [vmem:[%s8 + $0x90] sm:$0xff]
  %v906 = vld [vmem:[%s8 + $0x98] sm:$0xff]
  %v907 = vld [vmem:[%s8 + $0xa0] sm:$0xff]
  %v908 = vld [vmem:[%s8 + $0xa8] sm:$0xff]
  %v909 = vld [vmem:[%s8 + $0xb0] sm:$0xff]
  %v910 = vld [vmem:[%s8 + $0xb8] sm:$0xff]
  %v911 = vld [vmem:[%s8 + $0xc0] sm:$0xff]
  %v912 = vld [vmem:[%s8 + $0xc8] sm:$0xff]
  %v913 = vld [vmem:[%s8 + $0xd0] sm:$0xff]
  %v914 = vld [vmem:[%s8 + $0xd8] sm:$0xff]
  %v915 = vld [vmem:[%s8 + $0xe0] sm:$0xff]
  %v916 = vld [vmem:[%s8 + $0xe8] sm:$0xff]
  %v917 = vld [vmem:[%s8 + $0xf0] sm:$0xff]
  %v918 = vld [vmem:[%s8 + $0xf8] sm:$0xff]
  %v919 = vld [vmem:[%s9] sm:$0xf]
  %v921 = vperm.slane %v919, 0
  %v922 = vperm.slane %v919, 1
  %v923 = vperm.slane %v919, 2
  %v924 = vperm.slane %v919, 3
  %v961 = vunpack.c.l.b16 %v887
  %v962 = vunpack.c.h.b16 %v887
  %v963 = vunpack.c.l.b16 %v888
  %v964 = vunpack.c.h.b16 %v888
  %v965 = vunpack.c.l.b16 %v889
  %v966 = vunpack.c.h.b16 %v889
  %v967 = vunpack.c.l.b16 %v890
  %v968 = vunpack.c.h.b16 %v890
  %v969 = vunpack.c.l.b16 %v891
  %v970 = vunpack.c.h.b16 %v891
  %v971 = vunpack.c.l.b16 %v892
  %v972 = vunpack.c.h.b16 %v892
  %v973 = vunpack.c.l.b16 %v893
  %v974 = vunpack.c.h.b16 %v893
  %v975 = vunpack.c.l.b16 %v894
  %v976 = vunpack.c.h.b16 %v894
  %v977 = vunpack.c.l.b16 %v895
  %v978 = vunpack.c.h.b16 %v895
  %v979 = vunpack.c.l.b16 %v896
  %v980 = vunpack.c.h.b16 %v896
  %v981 = vunpack.c.l.b16 %v897
  %v982 = vunpack.c.h.b16 %v897
  %v983 = vunpack.c.l.b16 %v898
  %v984 = vunpack.c.h.b16 %v898
  %v985 = vunpack.c.l.b16 %v899
  %v986 = vunpack.c.h.b16 %v899
  %v987 = vunpack.c.l.b16 %v900
  %v988 = vunpack.c.h.b16 %v900
  %v989 = vunpack.c.l.b16 %v901
  %v990 = vunpack.c.h.b16 %v901
  %v991 = vunpack.c.l.b16 %v902
  %v992 = vunpack.c.h.b16 %v902
  %v993 = vunpack.c.l.b16 %v903
  %v994 = vunpack.c.h.b16 %v903
  %v995 = vunpack.c.l.b16 %v904
  %v996 = vunpack.c.h.b16 %v904
  %v997 = vunpack.c.l.b16 %v905
  %v998 = vunpack.c.h.b16 %v905
  %v999 = vunpack.c.l.b16 %v906
  %v1000 = vunpack.c.h.b16 %v906
  %v1001 = vunpack.c.l.b16 %v907
  %v1002 = vunpack.c.h.b16 %v907
  %v1003 = vunpack.c.l.b16 %v908
  %v1004 = vunpack.c.h.b16 %v908
  %v1005 = vunpack.c.l.b16 %v909
  %v1006 = vunpack.c.h.b16 %v909
  %v1007 = vunpack.c.l.b16 %v910
  %v1008 = vunpack.c.h.b16 %v910
  %v1009 = vunpack.c.l.b16 %v911
  %v1010 = vunpack.c.h.b16 %v911
  %v1011 = vunpack.c.l.b16 %v912
  %v1012 = vunpack.c.h.b16 %v912
  %v1013 = vunpack.c.l.b16 %v913
  %v1014 = vunpack.c.h.b16 %v913
  %v1015 = vunpack.c.l.b16 %v914
  %v1016 = vunpack.c.h.b16 %v914
  %v1017 = vunpack.c.l.b16 %v915
  %v1018 = vunpack.c.h.b16 %v915
  %v1019 = vunpack.c.l.b16 %v916
  %v1020 = vunpack.c.h.b16 %v916
  %v1021 = vunpack.c.l.b16 %v917
  %v1022 = vunpack.c.h.b16 %v917
  %v1023 = vunpack.c.l.b16 %v918
  %v1024 = vunpack.c.h.b16 %v918
  %v1025 = vpack.c.b16 %v965, %v961
  %v1026 = vpack.c.b16 %v966, %v962
  %v1027 = vpack.c.b16 %v967, %v963
  %v1028 = vpack.c.b16 %v968, %v964
  %v1029 = vpack.c.b16 %v973, %v969
  %v1030 = vpack.c.b16 %v974, %v970
  %v1031 = vpack.c.b16 %v975, %v971
  %v1032 = vpack.c.b16 %v976, %v972
  %v1033 = vpack.c.b16 %v981, %v977
  %v1034 = vpack.c.b16 %v982, %v978
  %v1035 = vpack.c.b16 %v983, %v979
  %v1036 = vpack.c.b16 %v984, %v980
  %v1037 = vpack.c.b16 %v989, %v985
  %v1038 = vpack.c.b16 %v990, %v986
  %v1039 = vpack.c.b16 %v991, %v987
  %v1040 = vpack.c.b16 %v992, %v988
  %v1041 = vpack.c.b16 %v997, %v993
  %v1042 = vpack.c.b16 %v998, %v994
  %v1043 = vpack.c.b16 %v999, %v995
  %v1044 = vpack.c.b16 %v1000, %v996
  %v1045 = vpack.c.b16 %v1005, %v1001
  %v1046 = vpack.c.b16 %v1006, %v1002
  %v1047 = vpack.c.b16 %v1007, %v1003
  %v1048 = vpack.c.b16 %v1008, %v1004
  %v1049 = vpack.c.b16 %v1013, %v1009
  %v1050 = vpack.c.b16 %v1014, %v1010
  %v1051 = vpack.c.b16 %v1015, %v1011
  %v1052 = vpack.c.b16 %v1016, %v1012
  %v1053 = vpack.c.b16 %v1021, %v1017
  %v1054 = vpack.c.b16 %v1022, %v1018
  %v1055 = vpack.c.b16 %v1023, %v1019
  %v1056 = vpack.c.b16 %v1024, %v1020
  %1089 = vmatpush.bf16.msra.mxu0 %v1053
  %1090 = vmatpush.bf16.msra.mxu0 %v1049
  %1091 = vmatpush.bf16.msra.mxu0 %v1045
  %1092 = vmatpush.bf16.msra.mxu0 %v1041
  %1093 = vmatpush.bf16.msra.mxu0 %v1037
  %1094 = vmatpush.bf16.msra.mxu0 %v1033
  %1095 = vmatpush.bf16.msra.mxu0 %v1029
  %1096 = vmatpush.bf16.msra.mxu0 %v1025
  %1097 = vmatmul.bf16.gmra.mxu0 %v886
  %v1098 = vpop.f32.mrf.mxu0
  %v1099 = vadd.f32 %v921, %v1098
  %v1100 = vpop.f32.mrf.mxu0
  %v1101 = vadd.f32 %v921, %v1100
  %1102 = vdwg.mxu0
  %1103 = vmatpush.bf16.msra.mxu0 %v1054
  %1104 = vmatpush.bf16.msra.mxu0 %v1050
  %1105 = vmatpush.bf16.msra.mxu0 %v1046
  %1106 = vmatpush.bf16.msra.mxu0 %v1042
  %1107 = vmatpush.bf16.msra.mxu0 %v1038
  %1108 = vmatpush.bf16.msra.mxu0 %v1034
  %1109 = vmatpush.bf16.msra.mxu0 %v1030
  %1110 = vmatpush.bf16.msra.mxu0 %v1026
  %1111 = vmatmul.bf16.gmra.mxu0 %v886
  %v1112 = vpop.f32.mrf.mxu0
  %v1113 = vadd.f32 %v922, %v1112
  %v1114 = vpop.f32.mrf.mxu0
  %v1115 = vadd.f32 %v922, %v1114
  %1116 = vdwg.mxu0
  %1117 = vmatpush.bf16.msra.mxu0 %v1055
  %1118 = vmatpush.bf16.msra.mxu0 %v1051
  %1119 = vmatpush.bf16.msra.mxu0 %v1047
  %1120 = vmatpush.bf16.msra.mxu0 %v1043
  %1121 = vmatpush.bf16.msra.mxu0 %v1039
  %1122 = vmatpush.bf16.msra.mxu0 %v1035
  %1123 = vmatpush.bf16.msra.mxu0 %v1031
  %1124 = vmatpush.bf16.msra.mxu0 %v1027
  %1125 = vmatmul.bf16.gmra.mxu0 %v886
  %v1126 = vpop.f32.mrf.mxu0
  %v1127 = vadd.f32 %v923, %v1126
  %v1128 = vpop.f32.mrf.mxu0
  %v1129 = vadd.f32 %v923, %v1128
  %1130 = vdwg.mxu0
  %1131 = vmatpush.bf16.msra.mxu0 %v1056
  %1132 = vmatpush.bf16.msra.mxu0 %v1052
  %1133 = vmatpush.bf16.msra.mxu0 %v1048
  %1134 = vmatpush.bf16.msra.mxu0 %v1044
  %1135 = vmatpush.bf16.msra.mxu0 %v1040
  %1136 = vmatpush.bf16.msra.mxu0 %v1036
  %1137 = vmatpush.bf16.msra.mxu0 %v1032
  %1138 = vmatpush.bf16.msra.mxu0 %v1028
  %1139 = vmatmul.bf16.gmra.mxu0 %v886
  %v1140 = vpop.f32.mrf.mxu0
  %v1141 = vadd.f32 %v924, %v1140
  %v1142 = vpop.f32.mrf.mxu0
  %v1143 = vadd.f32 %v924, %v1142
  %1144 = vdwg.mxu0
  %v1145 = vmax.f32 %v1099, 0.0
  %v1146 = vmax.f32 %v1113, 0.0
  %v1147 = vmax.f32 %v1127, 0.0
  %v1148 = vmax.f32 %v1141, 0.0
  %v1149 = vmax.f32 %v1101, 0.0
  %v1150 = vmax.f32 %v1115, 0.0
  %v1151 = vmax.f32 %v1129, 0.0
  %v1152 = vmax.f32 %v1143, 0.0
  %v1153 = vld [vmem:[%s7] sm:$0xff]
  %v1154 = vld [vmem:[%s7 + $0x8] sm:$0xff]
  %v1155 = vld [vmem:[%s7 + $0x10] sm:$0xff]
  %v1156 = vld [vmem:[%s7 + $0x18] sm:$0xff]
  %v1157 = vld [vmem:[%s7 + $0x20] sm:$0xff]
  %v1158 = vld [vmem:[%s7 + $0x28] sm:$0xff]
  %v1159 = vld [vmem:[%s7 + $0x30] sm:$0xff]
  %v1160 = vld [vmem:[%s7 + $0x38] sm:$0xff]
  %v1162 = vsel %vm641, %v846, 0
  %v1165 = vsel %vm641, %v847, 0
  %1167 = vmatpush.msra.mxu0 0.0
  %1168 = vmatpush.msra.mxu0 0.0
  %1169 = vmatpush.msra.mxu0 0.0
  %1170 = vmatpush.msra.mxu0 0.0
  %1171 = vmatpush.msra.mxu0 0.0
  %1172 = vmatpush.msra.mxu0 0.0
  %1173 = vmatpush.msra.mxu0 0.0
  %1174 = vmatpush.msra.mxu0 0.0
  %1175 = vmatpush.msra.mxu0 0.0
  %1176 = vmatpush.msra.mxu0 0.0
  %1177 = vmatpush.msra.mxu0 0.0
  %1178 = vmatpush.msra.mxu0 0.0
  %1179 = vmatpush.msra.mxu0 0.0
  %1180 = vmatpush.msra.mxu0 0.0
  %1181 = vmatpush.msra.mxu0 %v1157
  %1182 = vmatpush.msra.mxu0 %v1153
  %1183 = vmatmul.f32.gmra.mxu0 %v1162
  %v1184 = vpop.f32.mrf.mxu0
  %v1185 = vadd.f32 0.0, %v1184
  %1186 = vmatmul.f32.gmra.mxu0 %v1165
  %v1187 = vpop.f32.mrf.mxu0
  %v1188 = vadd.f32 0.0, %v1187
  %1189 = vdwg.mxu0
  %1190 = vmatpush.msra.mxu0 0.0
  %1191 = vmatpush.msra.mxu0 0.0
  %1192 = vmatpush.msra.mxu0 0.0
  %1193 = vmatpush.msra.mxu0 0.0
  %1194 = vmatpush.msra.mxu0 0.0
  %1195 = vmatpush.msra.mxu0 0.0
  %1196 = vmatpush.msra.mxu0 0.0
  %1197 = vmatpush.msra.mxu0 0.0
  %1198 = vmatpush.msra.mxu0 0.0
  %1199 = vmatpush.msra.mxu0 0.0
  %1200 = vmatpush.msra.mxu0 0.0
  %1201 = vmatpush.msra.mxu0 0.0
  %1202 = vmatpush.msra.mxu0 0.0
  %1203 = vmatpush.msra.mxu0 0.0
  %1204 = vmatpush.msra.mxu0 %v1158
  %1205 = vmatpush.msra.mxu0 %v1154
  %1206 = vmatmul.f32.gmra.mxu0 %v1162
  %v1207 = vpop.f32.mrf.mxu0
  %v1208 = vadd.f32 0.0, %v1207
  %1209 = vmatmul.f32.gmra.mxu0 %v1165
  %v1210 = vpop.f32.mrf.mxu0
  %v1211 = vadd.f32 0.0, %v1210
  %1212 = vdwg.mxu0
  %1213 = vmatpush.msra.mxu0 0.0
  %1214 = vmatpush.msra.mxu0 0.0
  %1215 = vmatpush.msra.mxu0 0.0
  %1216 = vmatpush.msra.mxu0 0.0
  %1217 = vmatpush.msra.mxu0 0.0
  %1218 = vmatpush.msra.mxu0 0.0
  %1219 = vmatpush.msra.mxu0 0.0
  %1220 = vmatpush.msra.mxu0 0.0
  %1221 = vmatpush.msra.mxu0 0.0
  %1222 = vmatpush.msra.mxu0 0.0
  %1223 = vmatpush.msra.mxu0 0.0
  %1224 = vmatpush.msra.mxu0 0.0
  %1225 = vmatpush.msra.mxu0 0.0
  %1226 = vmatpush.msra.mxu0 0.0
  %1227 = vmatpush.msra.mxu0 %v1159
  %1228 = vmatpush.msra.mxu0 %v1155
  %1229 = vmatmul.f32.gmra.mxu0 %v1162
  %v1230 = vpop.f32.mrf.mxu0
  %v1231 = vadd.f32 0.0, %v1230
  %1232 = vmatmul.f32.gmra.mxu0 %v1165
  %v1233 = vpop.f32.mrf.mxu0
  %v1234 = vadd.f32 0.0, %v1233
  %1235 = vdwg.mxu0
  %1236 = vmatpush.msra.mxu0 0.0
  %1237 = vmatpush.msra.mxu0 0.0
  %1238 = vmatpush.msra.mxu0 0.0
  %1239 = vmatpush.msra.mxu0 0.0
  %1240 = vmatpush.msra.mxu0 0.0
  %1241 = vmatpush.msra.mxu0 0.0
  %1242 = vmatpush.msra.mxu0 0.0
  %1243 = vmatpush.msra.mxu0 0.0
  %1244 = vmatpush.msra.mxu0 0.0
  %1245 = vmatpush.msra.mxu0 0.0
  %1246 = vmatpush.msra.mxu0 0.0
  %1247 = vmatpush.msra.mxu0 0.0
  %1248 = vmatpush.msra.mxu0 0.0
  %1249 = vmatpush.msra.mxu0 0.0
  %1250 = vmatpush.msra.mxu0 %v1160
  %1251 = vmatpush.msra.mxu0 %v1156
  %1252 = vmatmul.f32.gmra.mxu0 %v1162
  %v1253 = vpop.f32.mrf.mxu0
  %v1254 = vadd.f32 0.0, %v1253
  %1255 = vmatmul.f32.gmra.mxu0 %v1165
  %v1256 = vpop.f32.mrf.mxu0
  %v1257 = vadd.f32 0.0, %v1256
  %1258 = vdwg.mxu0
  %v1259 = vmul.f32 %v1145, %v1185
  %v1260 = vmul.f32 %v1146, %v1208
  %v1261 = vmul.f32 %v1147, %v1231
  %v1262 = vmul.f32 %v1148, %v1254
  %v1263 = vmul.f32 %v1149, %v1188
  %v1264 = vmul.f32 %v1150, %v1211
  %v1265 = vmul.f32 %v1151, %v1234
  %v1266 = vmul.f32 %v1152, %v1257
  %v1267 = vpack.c.bf16 %v1263, %v1259
  %v1268 = vpack.c.bf16 %v1264, %v1260
  %v1269 = vpack.c.bf16 %v1265, %v1261
  %v1270 = vpack.c.bf16 %v1266, %v1262
  %v1271 = vld [vmem:[%s10] sm:$0xf]
  %v1272 = vld [vmem:[%s10 + $0x4] sm:$0xf]
  %v1273 = vld [vmem:[%s10 + $0x8] sm:$0xf]
  %v1274 = vld [vmem:[%s10 + $0xc] sm:$0xf]
  %v1275 = vld [vmem:[%s10 + $0x10] sm:$0xf]
  %v1276 = vld [vmem:[%s10 + $0x14] sm:$0xf]
  %v1277 = vld [vmem:[%s10 + $0x18] sm:$0xf]
  %v1278 = vld [vmem:[%s10 + $0x1c] sm:$0xf]
  %v1279 = vld [vmem:[%s10 + $0x20] sm:$0xf]
  %v1280 = vld [vmem:[%s10 + $0x24] sm:$0xf]
  %v1281 = vld [vmem:[%s10 + $0x28] sm:$0xf]
  %v1282 = vld [vmem:[%s10 + $0x2c] sm:$0xf]
  %v1283 = vld [vmem:[%s10 + $0x30] sm:$0xf]
  %v1284 = vld [vmem:[%s10 + $0x34] sm:$0xf]
  %v1285 = vld [vmem:[%s10 + $0x38] sm:$0xf]
  %v1286 = vld [vmem:[%s10 + $0x3c] sm:$0xf]
  %v1287 = vld [vmem:[%s10 + $0x40] sm:$0xf]
  %v1288 = vld [vmem:[%s10 + $0x44] sm:$0xf]
  %v1289 = vld [vmem:[%s10 + $0x48] sm:$0xf]
  %v1290 = vld [vmem:[%s10 + $0x4c] sm:$0xf]
  %v1291 = vld [vmem:[%s10 + $0x50] sm:$0xf]
  %v1292 = vld [vmem:[%s10 + $0x54] sm:$0xf]
  %v1293 = vld [vmem:[%s10 + $0x58] sm:$0xf]
  %v1294 = vld [vmem:[%s10 + $0x5c] sm:$0xf]
  %v1295 = vld [vmem:[%s10 + $0x60] sm:$0xf]
  %v1296 = vld [vmem:[%s10 + $0x64] sm:$0xf]
  %v1297 = vld [vmem:[%s10 + $0x68] sm:$0xf]
  %v1298 = vld [vmem:[%s10 + $0x6c] sm:$0xf]
  %v1299 = vld [vmem:[%s10 + $0x70] sm:$0xf]
  %v1300 = vld [vmem:[%s10 + $0x74] sm:$0xf]
  %v1301 = vld [vmem:[%s10 + $0x78] sm:$0xf]
  %v1302 = vld [vmem:[%s10 + $0x7c] sm:$0xf]
  %v1303 = vld [vmem:[%s10 + $0x80] sm:$0xf]
  %v1304 = vld [vmem:[%s10 + $0x84] sm:$0xf]
  %v1305 = vld [vmem:[%s10 + $0x88] sm:$0xf]
  %v1306 = vld [vmem:[%s10 + $0x8c] sm:$0xf]
  %v1307 = vld [vmem:[%s10 + $0x90] sm:$0xf]
  %v1308 = vld [vmem:[%s10 + $0x94] sm:$0xf]
  %v1309 = vld [vmem:[%s10 + $0x98] sm:$0xf]
  %v1310 = vld [vmem:[%s10 + $0x9c] sm:$0xf]
  %v1311 = vld [vmem:[%s10 + $0xa0] sm:$0xf]
  %v1312 = vld [vmem:[%s10 + $0xa4] sm:$0xf]
  %v1313 = vld [vmem:[%s10 + $0xa8] sm:$0xf]
  %v1314 = vld [vmem:[%s10 + $0xac] sm:$0xf]
  %v1315 = vld [vmem:[%s10 + $0xb0] sm:$0xf]
  %v1316 = vld [vmem:[%s10 + $0xb4] sm:$0xf]
  %v1317 = vld [vmem:[%s10 + $0xb8] sm:$0xf]
  %v1318 = vld [vmem:[%s10 + $0xbc] sm:$0xf]
  %v1319 = vld [vmem:[%s10 + $0xc0] sm:$0xf]
  %v1320 = vld [vmem:[%s10 + $0xc4] sm:$0xf]
  %v1321 = vld [vmem:[%s10 + $0xc8] sm:$0xf]
  %v1322 = vld [vmem:[%s10 + $0xcc] sm:$0xf]
  %v1323 = vld [vmem:[%s10 + $0xd0] sm:$0xf]
  %v1324 = vld [vmem:[%s10 + $0xd4] sm:$0xf]
  %v1325 = vld [vmem:[%s10 + $0xd8] sm:$0xf]
  %v1326 = vld [vmem:[%s10 + $0xdc] sm:$0xf]
  %v1327 = vld [vmem:[%s10 + $0xe0] sm:$0xf]
  %v1328 = vld [vmem:[%s10 + $0xe4] sm:$0xf]
  %v1329 = vld [vmem:[%s10 + $0xe8] sm:$0xf]
  %v1330 = vld [vmem:[%s10 + $0xec] sm:$0xf]
  %v1331 = vld [vmem:[%s10 + $0xf0] sm:$0xf]
  %v1332 = vld [vmem:[%s10 + $0xf4] sm:$0xf]
  %v1333 = vld [vmem:[%s10 + $0xf8] sm:$0xf]
  %v1334 = vld [vmem:[%s10 + $0xfc] sm:$0xf]
  %v1335 = vld [vmem:[%s11] sm:$0xff]
  %v1336 = vld [vmem:[%s11 + $0x8] sm:$0xff]
  %1337 = vmatpush.msra.mxu0 0.0
  %1338 = vmatpush.msra.mxu0 0.0
  %1339 = vmatpush.msra.mxu0 0.0
  %1340 = vmatpush.msra.mxu0 0.0
  %1341 = vmatpush.msra.mxu0 0.0
  %1342 = vmatpush.msra.mxu0 0.0
  %1343 = vmatpush.msra.mxu0 0.0
  %1344 = vmatpush.msra.mxu0 0.0
  %1345 = vmatpush.msra.mxu0 0.0
  %1346 = vmatpush.msra.mxu0 0.0
  %1347 = vmatpush.msra.mxu0 0.0
  %1348 = vmatpush.msra.mxu0 0.0
  %1349 = vmatpush.msra.mxu0 0.0
  %1350 = vmatpush.msra.mxu0 0.0
  %1351 = vmatpush.msra.mxu0 %v1336
  %1352 = vmatpush.msra.mxu0 %v1335
  %1353 = vmatmul.f32.gmra.mxu0 %v1162
  %v1354 = vpop.f32.mrf.mxu0
  %v1355 = vadd.f32 0.0, %v1354
  %1356 = vmatmul.f32.gmra.mxu0 %v1165
  %v1357 = vpop.f32.mrf.mxu0
  %v1358 = vadd.f32 0.0, %v1357
  %1359 = vdwg.mxu0
  %v1424 = vunpack.c.l.b16 %v1271
  %v1425 = vunpack.c.l.b16 %v1272
  %v1426 = vunpack.c.l.b16 %v1273
  %v1427 = vunpack.c.l.b16 %v1274
  %v1428 = vunpack.c.l.b16 %v1275
  %v1429 = vunpack.c.l.b16 %v1276
  %v1430 = vunpack.c.l.b16 %v1277
  %v1431 = vunpack.c.l.b16 %v1278
  %v1432 = vunpack.c.l.b16 %v1279
  %v1433 = vunpack.c.l.b16 %v1280
  %v1434 = vunpack.c.l.b16 %v1281
  %v1435 = vunpack.c.l.b16 %v1282
  %v1436 = vunpack.c.l.b16 %v1283
  %v1437 = vunpack.c.l.b16 %v1284
  %v1438 = vunpack.c.l.b16 %v1285
  %v1439 = vunpack.c.l.b16 %v1286
  %v1440 = vunpack.c.l.b16 %v1287
  %v1441 = vunpack.c.l.b16 %v1288
  %v1442 = vunpack.c.l.b16 %v1289
  %v1443 = vunpack.c.l.b16 %v1290
  %v1444 = vunpack.c.l.b16 %v1291
  %v1445 = vunpack.c.l.b16 %v1292
  %v1446 = vunpack.c.l.b16 %v1293
  %v1447 = vunpack.c.l.b16 %v1294
  %v1448 = vunpack.c.l.b16 %v1295
  %v1449 = vunpack.c.l.b16 %v1296
  %v1450 = vunpack.c.l.b16 %v1297
  %v1451 = vunpack.c.l.b16 %v1298
  %v1452 = vunpack.c.l.b16 %v1299
  %v1453 = vunpack.c.l.b16 %v1300
  %v1454 = vunpack.c.l.b16 %v1301
  %v1455 = vunpack.c.l.b16 %v1302
  %v1456 = vunpack.c.l.b16 %v1303
  %v1457 = vunpack.c.l.b16 %v1304
  %v1458 = vunpack.c.l.b16 %v1305
  %v1459 = vunpack.c.l.b16 %v1306
  %v1460 = vunpack.c.l.b16 %v1307
  %v1461 = vunpack.c.l.b16 %v1308
  %v1462 = vunpack.c.l.b16 %v1309
  %v1463 = vunpack.c.l.b16 %v1310
  %v1464 = vunpack.c.l.b16 %v1311
  %v1465 = vunpack.c.l.b16 %v1312
  %v1466 = vunpack.c.l.b16 %v1313
  %v1467 = vunpack.c.l.b16 %v1314
  %v1468 = vunpack.c.l.b16 %v1315
  %v1469 = vunpack.c.l.b16 %v1316
  %v1470 = vunpack.c.l.b16 %v1317
  %v1471 = vunpack.c.l.b16 %v1318
  %v1472 = vunpack.c.l.b16 %v1319
  %v1473 = vunpack.c.l.b16 %v1320
  %v1474 = vunpack.c.l.b16 %v1321
  %v1475 = vunpack.c.l.b16 %v1322
  %v1476 = vunpack.c.l.b16 %v1323
  %v1477 = vunpack.c.l.b16 %v1324
  %v1478 = vunpack.c.l.b16 %v1325
  %v1479 = vunpack.c.l.b16 %v1326
  %v1480 = vunpack.c.l.b16 %v1327
  %v1481 = vunpack.c.l.b16 %v1328
  %v1482 = vunpack.c.l.b16 %v1329
  %v1483 = vunpack.c.l.b16 %v1330
  %v1484 = vunpack.c.l.b16 %v1331
  %v1485 = vunpack.c.l.b16 %v1332
  %v1486 = vunpack.c.l.b16 %v1333
  %v1487 = vunpack.c.l.b16 %v1334
  %v1488 = vpack.c.b16 %v1425, %v1424
  %v1489 = vpack.c.b16 %v1427, %v1426
  %v1490 = vpack.c.b16 %v1429, %v1428
  %v1491 = vpack.c.b16 %v1431, %v1430
  %v1492 = vpack.c.b16 %v1433, %v1432
  %v1493 = vpack.c.b16 %v1435, %v1434
  %v1494 = vpack.c.b16 %v1437, %v1436
  %v1495 = vpack.c.b16 %v1439, %v1438
  %v1496 = vpack.c.b16 %v1441, %v1440
  %v1497 = vpack.c.b16 %v1443, %v1442
  %v1498 = vpack.c.b16 %v1445, %v1444
  %v1499 = vpack.c.b16 %v1447, %v1446
  %v1500 = vpack.c.b16 %v1449, %v1448
  %v1501 = vpack.c.b16 %v1451, %v1450
  %v1502 = vpack.c.b16 %v1453, %v1452
  %v1503 = vpack.c.b16 %v1455, %v1454
  %v1504 = vpack.c.b16 %v1457, %v1456
  %v1505 = vpack.c.b16 %v1459, %v1458
  %v1506 = vpack.c.b16 %v1461, %v1460
  %v1507 = vpack.c.b16 %v1463, %v1462
  %v1508 = vpack.c.b16 %v1465, %v1464
  %v1509 = vpack.c.b16 %v1467, %v1466
  %v1510 = vpack.c.b16 %v1469, %v1468
  %v1511 = vpack.c.b16 %v1471, %v1470
  %v1512 = vpack.c.b16 %v1473, %v1472
  %v1513 = vpack.c.b16 %v1475, %v1474
  %v1514 = vpack.c.b16 %v1477, %v1476
  %v1515 = vpack.c.b16 %v1479, %v1478
  %v1516 = vpack.c.b16 %v1481, %v1480
  %v1517 = vpack.c.b16 %v1483, %v1482
  %v1518 = vpack.c.b16 %v1485, %v1484
  %v1519 = vpack.c.b16 %v1487, %v1486
  %1552 = vmatpush.bf16.msra.mxu0 %v1495
  %1553 = vmatpush.bf16.msra.mxu0 %v1494
  %1554 = vmatpush.bf16.msra.mxu0 %v1493
  %1555 = vmatpush.bf16.msra.mxu0 %v1492
  %1556 = vmatpush.bf16.msra.mxu0 %v1491
  %1557 = vmatpush.bf16.msra.mxu0 %v1490
  %1558 = vmatpush.bf16.msra.mxu0 %v1489
  %1559 = vmatpush.bf16.msra.mxu0 %v1488
  %1560 = vmatmul.bf16.gmra.mxu0 %v1267
  %v1561 = vpop.f32.mrf.mxu0
  %v1562 = vadd.f32 %v1355, %v1561
  %v1563 = vpop.f32.mrf.mxu0
  %v1564 = vadd.f32 %v1358, %v1563
  %1565 = vdwg.mxu0
  %1566 = vmatpush.bf16.msra.mxu0 %v1503
  %1567 = vmatpush.bf16.msra.mxu0 %v1502
  %1568 = vmatpush.bf16.msra.mxu0 %v1501
  %1569 = vmatpush.bf16.msra.mxu0 %v1500
  %1570 = vmatpush.bf16.msra.mxu0 %v1499
  %1571 = vmatpush.bf16.msra.mxu0 %v1498
  %1572 = vmatpush.bf16.msra.mxu0 %v1497
  %1573 = vmatpush.bf16.msra.mxu0 %v1496
  %1574 = vmatmul.bf16.gmra.mxu0 %v1268
  %v1575 = vpop.f32.mrf.mxu0
  %v1576 = vadd.f32 %v1562, %v1575
  %v1577 = vpop.f32.mrf.mxu0
  %v1578 = vadd.f32 %v1564, %v1577
  %1579 = vdwg.mxu0
  %1580 = vmatpush.bf16.msra.mxu0 %v1511
  %1581 = vmatpush.bf16.msra.mxu0 %v1510
  %1582 = vmatpush.bf16.msra.mxu0 %v1509
  %1583 = vmatpush.bf16.msra.mxu0 %v1508
  %1584 = vmatpush.bf16.msra.mxu0 %v1507
  %1585 = vmatpush.bf16.msra.mxu0 %v1506
  %1586 = vmatpush.bf16.msra.mxu0 %v1505
  %1587 = vmatpush.bf16.msra.mxu0 %v1504
  %1588 = vmatmul.bf16.gmra.mxu0 %v1269
  %v1589 = vpop.f32.mrf.mxu0
  %v1590 = vadd.f32 %v1576, %v1589
  %v1591 = vpop.f32.mrf.mxu0
  %v1592 = vadd.f32 %v1578, %v1591
  %1593 = vdwg.mxu0
  %1594 = vmatpush.bf16.msra.mxu0 %v1519
  %1595 = vmatpush.bf16.msra.mxu0 %v1518
  %1596 = vmatpush.bf16.msra.mxu0 %v1517
  %1597 = vmatpush.bf16.msra.mxu0 %v1516
  %1598 = vmatpush.bf16.msra.mxu0 %v1515
  %1599 = vmatpush.bf16.msra.mxu0 %v1514
  %1600 = vmatpush.bf16.msra.mxu0 %v1513
  %1601 = vmatpush.bf16.msra.mxu0 %v1512
  %1602 = vmatmul.bf16.gmra.mxu0 %v1270
  %v1603 = vpop.f32.mrf.mxu0
  %v1604 = vadd.f32 %v1590, %v1603
  %v1605 = vpop.f32.mrf.mxu0
  %v1606 = vadd.f32 %v1592, %v1605
  %1607 = vdwg.mxu0
  %v1608 = vmax.f32 %v1604, 0.0
  %v1609 = vmax.f32 %v1606, 0.0
  %v1610 = vadd.f32 %v1608, %v583
  %v1611 = vadd.f32 %v1609, %v584
  %v1612 = vpack.c.bf16 %v1611, %v1610
  %v1613 = vld [vmem:[%s12] sm:$0xf]
  %v1614 = vld [vmem:[%s12 + $0x4] sm:$0xf]
  %v1615 = vld [vmem:[%s12 + $0x8] sm:$0xf]
  %v1616 = vld [vmem:[%s12 + $0xc] sm:$0xf]
  %v1617 = vld [vmem:[%s12 + $0x10] sm:$0xf]
  %v1618 = vld [vmem:[%s12 + $0x14] sm:$0xf]
  %v1619 = vld [vmem:[%s12 + $0x18] sm:$0xf]
  %v1620 = vld [vmem:[%s12 + $0x1c] sm:$0xf]
  %v1621 = vld [vmem:[%s12 + $0x20] sm:$0xf]
  %v1622 = vld [vmem:[%s12 + $0x24] sm:$0xf]
  %v1623 = vld [vmem:[%s12 + $0x28] sm:$0xf]
  %v1624 = vld [vmem:[%s12 + $0x2c] sm:$0xf]
  %v1625 = vld [vmem:[%s12 + $0x30] sm:$0xf]
  %v1626 = vld [vmem:[%s12 + $0x34] sm:$0xf]
  %v1627 = vld [vmem:[%s12 + $0x38] sm:$0xf]
  %v1628 = vld [vmem:[%s12 + $0x3c] sm:$0xf]
  %v1629 = vld [vmem:[%s13] sm:$0x1]
  %v1631 = vperm.slane %v1629, 0
  %v1649 = vunpack.c.l.b16 %v1613
  %v1650 = vunpack.c.l.b16 %v1614
  %v1651 = vunpack.c.l.b16 %v1615
  %v1652 = vunpack.c.l.b16 %v1616
  %v1653 = vunpack.c.l.b16 %v1617
  %v1654 = vunpack.c.l.b16 %v1618
  %v1655 = vunpack.c.l.b16 %v1619
  %v1656 = vunpack.c.l.b16 %v1620
  %v1657 = vunpack.c.l.b16 %v1621
  %v1658 = vunpack.c.l.b16 %v1622
  %v1659 = vunpack.c.l.b16 %v1623
  %v1660 = vunpack.c.l.b16 %v1624
  %v1661 = vunpack.c.l.b16 %v1625
  %v1662 = vunpack.c.l.b16 %v1626
  %v1663 = vunpack.c.l.b16 %v1627
  %v1664 = vunpack.c.l.b16 %v1628
  %v1665 = vpack.c.b16 %v1650, %v1649
  %v1666 = vpack.c.b16 %v1652, %v1651
  %v1667 = vpack.c.b16 %v1654, %v1653
  %v1668 = vpack.c.b16 %v1656, %v1655
  %v1669 = vpack.c.b16 %v1658, %v1657
  %v1670 = vpack.c.b16 %v1660, %v1659
  %v1671 = vpack.c.b16 %v1662, %v1661
  %v1672 = vpack.c.b16 %v1664, %v1663
  %1681 = vmatpush.bf16.msra.mxu0 %v1672
  %1682 = vmatpush.bf16.msra.mxu0 %v1671
  %1683 = vmatpush.bf16.msra.mxu0 %v1670
  %1684 = vmatpush.bf16.msra.mxu0 %v1669
  %1685 = vmatpush.bf16.msra.mxu0 %v1668
  %1686 = vmatpush.bf16.msra.mxu0 %v1667
  %1687 = vmatpush.bf16.msra.mxu0 %v1666
  %1688 = vmatpush.bf16.msra.mxu0 %v1665
  %1689 = vmatmul.bf16.gmra.mxu0 %v1612
  %v1690 = vpop.f32.mrf.mxu0
  %v1691 = vadd.f32 %v1631, %v1690
  %v1692 = vpop.f32.mrf.mxu0
  %v1693 = vadd.f32 %v1631, %v1692
  %1694 = vdwg.mxu0
  %v1695 = vadd.f32 %v1691, %v1693
  %1696 = vst [vmem:[%s14] sm:$0xff] %v1695
  %v1697 = vsel %vm641, %v846, 0.0
  %v1698 = vsel %vm641, %v847, 0.0
  %1699 = vst [vmem:[%s16] sm:$0xff] %v1697
  %1700 = vst [vmem:[%s16 + $0x8] sm:$0xff] %v1698
  %vm1701 = vcmask 1040384
  %v1702 = vsel %vm1701, %v874, %v885
  %vm1703 = vcmask 1041408
  %v1704 = vsel %vm1703, %v1702, 0.0
  %v1705 = vsel %vm641, %v1704, 0.0
  %1706 = vst [vmem:[%s16 + $0x10] sm:$0xff] %v1705
  // Predicated region
  $region58: #{food_model_forward.1} parent=0 // pred_check
    _
  $region59: #{food_model_forward.1} parent=0 // pred_check_branch
    %1708 = sbr.rel (0) target = $region61
  $region60: #{food_model_forward.1} parent=0 // pred_region
    _
  $region61: #{food_model_forward.1} parent=0 // pred_fallthru
    _
  // Predicated region
  $region62: #{food_model_forward.1} parent=0 // pred_check
    _
  $region63: #{food_model_forward.1} parent=0 // pred_check_branch
    %1710 = sbr.rel (0) target = $region65
  $region64: #{food_model_forward.1} parent=0 // pred_region
    _
  $region65: #{food_model_forward.1} parent=0 // pred_fallthru
    _
  // Predicated region
  $region66: #{food_model_forward.1} parent=0 // pred_check
    _
  $region67: #{food_model_forward.1} parent=0 // pred_check_branch
    %1712 = sbr.rel (0) target = $region69
  $region68: #{food_model_forward.1} parent=0 // pred_region
    _
  $region69: #{food_model_forward.1} parent=0 // pred_fallthru
    _
  // Predicated region
  $region70: #{food_model_forward.1} parent=0 // pred_check
    _
  $region71: #{food_model_forward.1} parent=0 // pred_check_branch
    %1714 = sbr.rel (0) target = $region73
  $region72: #{food_model_forward.1} parent=0 // pred_region
    _
  $region73: #{food_model_forward.1} parent=0 // pred_fallthru
    _
  // Predicated region
  $region74: #{food_model_forward.1} parent=0 // pred_check
    _
  $region75: #{food_model_forward.1} parent=0 // pred_check_branch
    %1716 = sbr.rel (0) target = $region77
  $region76: #{food_model_forward.1} parent=0 // pred_region
    _
  $region77: #{food_model_forward.1} parent=0 // pred_fallthru
    _
  // Predicated region
  $region78: #{food_model_forward.1} parent=0 // pred_check
    _
  $region79: #{food_model_forward.1} parent=0 // pred_check_branch
    %1718 = sbr.rel (0) target = $region81
  $region80: #{food_model_forward.1} parent=0 // pred_region
    _
  $region81: #{food_model_forward.1} parent=0 // pred_fallthru
    _

</llo_original>
